<compile_context>
chip_gen: v7x
topology: tpu7x:2x2x1
jax: 0.10.0
libtpu: 0.0.40
codegen_flags: <defaults>
</compile_context>

<pallas_src>
import functools

import jax
import jax.numpy as jnp
from jax.experimental import pallas as pl
from jax.experimental.pallas import tpu as pltpu


LANE = 128  # TPU lane width; feature dims are zero-padded to a multiple of this.


def _round_up(v, m=LANE):
    return ((v + m - 1) // m) * m


def _vmem_capacity_bytes():
    """Per-core VMEM capacity; conservative fallback (v7x) if the query fails."""
    try:
        return int(pltpu.get_tpu_info().vmem_capacity_bytes)
    except Exception:
        return 64 << 20


def _vmem_limit(need_bytes, cap_bytes):
    """Scoped-VMEM limit sized from actual buffers, with headroom, capped below HW."""
    return int(min(max(int(need_bytes) * 2, 32 << 20), (cap_bytes * 7) // 8))


def _pick_tm(n, target):
    """Largest row-tile <= target that divides n and is a multiple of 8 (else n)."""
    tm = max(8, min(int(target), n))
    for cand in range(tm - tm % 8, 7, -8):
        if cand > 0 and n % cand == 0:
            return cand
    return n


# ---------------------------------------------------------------------------
# Fully-resident fused kernel: all three HeteroGraphConv(sum) layers in one call.
#   a_ref  : (R, N, N)  normalized adjacencies (compute dtype)
#   x_ref  : (N, FP)    zero-padded input features (compute dtype)
#   w*_ref : (R, FP, FP) zero-padded per-relation weights of layer * (compute dtype)
#   b*_ref : (1, FP)    per-layer biases, pre-summed over relations, f32
#   o_ref  : (N, FP)    padded output (sliced back to out_feats in the wrapper)
# ---------------------------------------------------------------------------
def _rgcn3_fused_kernel(a_ref, x_ref, w1_ref, w2_ref, w3_ref,
                        b1_ref, b2_ref, b3_ref, o_ref, *, n_rel):
    compute_dtype = x_ref.dtype

    def layer(h, w_ref, b_ref, relu):
        acc = None
        for r in range(n_rel):
            # H @ W_r (f32 acc), fed back at compute dtype, then A_r @ (HW_r).
            hw = jnp.dot(h, w_ref[r], preferred_element_type=jnp.float32)
            hw = hw.astype(compute_dtype)
            part = jnp.dot(a_ref[r], hw, preferred_element_type=jnp.float32)
            acc = part if acc is None else acc + part
        out = acc + b_ref[...]
        if relu:
            out = jnp.maximum(out, 0.0)
        return out  # f32

    h = layer(x_ref[...], w1_ref, b1_ref, True).astype(compute_dtype)
    h = layer(h, w2_ref, b2_ref, True).astype(compute_dtype)
    o_ref[...] = layer(h, w3_ref, b3_ref, False).astype(o_ref.dtype)


# ---------------------------------------------------------------------------
# Row-tiled per-layer kernel (large-N path).
#   a_ref : (R, TM, N) destination-row tile of the adjacencies
#   h_ref : (N, FP)    full input features of this layer (resident across the grid)
#   w_ref : (R, FP, FP), b_ref: (1, FP)
#   o_ref : (TM, FP)
# ---------------------------------------------------------------------------
def _rgcn_layer_tiled_kernel(a_ref, h_ref, w_ref, b_ref, o_ref, *, n_rel, relu):
    h = h_ref[...]
    acc = None
    for r in range(n_rel):
        ah = jnp.dot(a_ref[r], h, preferred_element_type=jnp.float32).astype(h.dtype)
        part = jnp.dot(ah, w_ref[r], preferred_element_type=jnp.float32)
        acc = part if acc is None else acc + part
    out = acc + b_ref[...]
    if relu:
        out = jnp.maximum(out, 0.0)
    o_ref[...] = out.astype(o_ref.dtype)


def _layer_tiled(a, h, w, b, *, tm, relu, out_dtype):
    R, N, _ = a.shape
    FP = w.shape[-1]
    grid = (N // tm,)
    flops = 2 * R * (N * N * FP + N * FP * FP)
    bytes_accessed = int(a.size * a.dtype.itemsize + h.size * h.dtype.itemsize
                         + w.size * w.dtype.itemsize + b.size * 4
                         + N * FP * jnp.dtype(out_dtype).itemsize)
    vmem_need = (2 * R * tm * N * a.dtype.itemsize          # double-buffered A tiles
                 + h.size * h.dtype.itemsize                 # resident H
                 + w.size * w.dtype.itemsize + b.size * 4    # resident W, b
                 + 2 * tm * FP * jnp.dtype(out_dtype).itemsize
                 + 4 * tm * FP * 4)                          # f32 intermediates
    cap = _vmem_capacity_bytes()
    return pl.pallas_call(
        functools.partial(_rgcn_layer_tiled_kernel, n_rel=R, relu=relu),
        out_shape=jax.ShapeDtypeStruct((N, FP), out_dtype),
        grid=grid,
        in_specs=[
            pl.BlockSpec((R, tm, N), lambda i: (0, i, 0)),
            pl.BlockSpec((N, FP), lambda i: (0, 0)),
            pl.BlockSpec((R, FP, FP), lambda i: (0, 0, 0)),
            pl.BlockSpec((1, FP), lambda i: (0, 0)),
        ],
        out_specs=pl.BlockSpec((tm, FP), lambda i: (i, 0)),
        compiler_params=pltpu.CompilerParams(
            dimension_semantics=("parallel",),
            vmem_limit_bytes=_vmem_limit(vmem_need, cap)),
        cost_estimate=pl.CostEstimate(flops=flops, transcendentals=0,
                                      bytes_accessed=bytes_accessed),
    )(a, h, w, b)


# ---------------------------------------------------------------------------
# Graph/parameter-static preprocessing (hoisted out of the per-call path).
# ---------------------------------------------------------------------------
def prepare_rgcn(a_norm, params, compute_dtype=jnp.float32):
    """a_norm: (R, N, N) normalized adjacencies; params: ((w,b) x 3),
    w*: (R, fin, fout), b*: (R, 1, fout). Accumulation is always f32."""
    (w1, b1), (w2, b2), (w3, b3) = params
    in_feats = w1.shape[1]
    out_feats = w3.shape[2]
    FP = _round_up(max(in_feats, w1.shape[2], w2.shape[2], w3.shape[2], out_feats))

    def pad_w(w):
        w = jnp.pad(w, ((0, 0), (0, FP - w.shape[1]), (0, FP - w.shape[2])))
        return w.astype(compute_dtype)

    def pad_b(b):  # HeteroGraphConv(sum) adds every relation's bias once
        bs = b.sum(axis=0)
        return jnp.pad(bs, ((0, 0), (0, FP - bs.shape[1]))).astype(jnp.float32)

    return dict(
        a=a_norm.astype(compute_dtype),
        ws=(pad_w(w1), pad_w(w2), pad_w(w3)),
        bs=(pad_b(b1), pad_b(b2), pad_b(b3)),
        fp=FP, in_feats=in_feats, out_feats=out_feats,
        compute_dtype=compute_dtype)


# ---------------------------------------------------------------------------
# Forward. Dropout is identity (eval-mode semantics).
# TODO(synk): F.dropout with training=True depends on PyTorch RNG; identity here.
# ---------------------------------------------------------------------------
def rgcn_forward(prep, x, *, tiled=None, tm_target=256):
    a = prep["a"]
    w1, w2, w3 = prep["ws"]
    b1, b2, b3 = prep["bs"]
    FP, out_feats, cdt = prep["fp"], prep["out_feats"], prep["compute_dtype"]
    R, N, _ = a.shape
    out_dtype = x.dtype
    itemsize = jnp.dtype(cdt).itemsize

    x_pad = jnp.pad(x, ((0, 0), (0, FP - x.shape[1]))).astype(cdt)

    resident_bytes = (a.size * itemsize + x_pad.size * itemsize
                      + sum(w.size for w in (w1, w2, w3)) * itemsize
                      + 3 * FP * 4
                      + N * FP * jnp.dtype(out_dtype).itemsize
                      + 4 * N * FP * 4)  # f32 intermediates headroom
    cap = _vmem_capacity_bytes()
    if tiled is None:
        tiled = resident_bytes > (cap * 3) // 4

    if not tiled:
        flops = 3 * 2 * R * (N * N * FP + N * FP * FP)
        out_pad = pl.pallas_call(
            functools.partial(_rgcn3_fused_kernel, n_rel=R),
            out_shape=jax.ShapeDtypeStruct((N, FP), out_dtype),
            in_specs=[pl.BlockSpec(memory_space=pltpu.MemorySpace.VMEM)
                      for _ in range(8)],
            out_specs=pl.BlockSpec(memory_space=pltpu.MemorySpace.VMEM),
            compiler_params=pltpu.CompilerParams(
                vmem_limit_bytes=_vmem_limit(resident_bytes, cap)),
            cost_estimate=pl.CostEstimate(flops=flops, transcendentals=0,
                                          bytes_accessed=int(resident_bytes)),
        )(a, x_pad, w1, w2, w3, b1, b2, b3)
    else:
        tm = _pick_tm(N, tm_target)
        # TODO(synk): single pallas_call with grid=(3, N//tm) ("arbitrary" rows) and a
        #             persistent (N, FP) VMEM scratch for H would avoid even the tiny
        #             hidden-state HBM round-trip, at the cost of the "parallel" row axis.
        h = _layer_tiled(a, x_pad, w1, b1, tm=tm, relu=True, out_dtype=cdt)
        h = _layer_tiled(a, h, w2, b2, tm=tm, relu=True, out_dtype=cdt)
        out_pad = _layer_tiled(a, h, w3, b3, tm=tm, relu=False, out_dtype=out_dtype)

    return out_pad[:, :out_feats]


# ---------------------------------------------------------------------------
# Glue: symmetric ('both') normalization + plain-JAX reference.
# ---------------------------------------------------------------------------
def normalize_adjacency(adj):
    """adj: (R, N, N) with adj[r, d, s] = 1 for edge s -> d under relation r."""
    out_deg = jnp.maximum(adj.sum(axis=1), 1.0)  # per-relation out-degree of src
    in_deg = jnp.maximum(adj.sum(axis=2), 1.0)   # per-relation in-degree of dst
    return adj * (in_deg[:, :, None] ** -0.5) * (out_deg[:, None, :] ** -0.5)


def reference_layer(a_norm, x, w, b, apply_relu):
    out = jnp.einsum("rds,sf,rfo->do", a_norm, x, w) + b.sum(axis=0)[0]
    return jnp.maximum(out, 0.0) if apply_relu else out


def reference_forward(a_norm, x, params):
    (w1, b1), (w2, b2), (w3, b3) = params
    h = reference_layer(a_norm, x, w1, b1, True)
    h = reference_layer(a_norm, h, w2, b2, True)
    return reference_layer(a_norm, h, w3, b3, False)


if __name__ == "__main__":
    key = jax.random.PRNGKey(0)

    N = 64          # number of nodes (single node type)
    R = 3           # number of relations (edge types)
    IN_FEATS = 32
    HID_FEATS = 32
    OUT_FEATS = 16

    k_adj, k_x, k1, k2, k3 = jax.random.split(key, 5)

    adj = jax.random.bernoulli(k_adj, p=0.15, shape=(R, N, N)).astype(jnp.float32)
    a_norm = normalize_adjacency(adj)
    x = jax.random.normal(k_x, (N, IN_FEATS), dtype=jnp.float32)

    def init_layer(k, fin, fout):
        bound = (6.0 / (fin + fout)) ** 0.5
        w = jax.random.uniform(k, (R, fin, fout), jnp.float32, -bound, bound)
        b = jnp.zeros((R, 1, fout), jnp.float32)
        return w, b

    params = (
        init_layer(k1, IN_FEATS, HID_FEATS),
        init_layer(k2, HID_FEATS, HID_FEATS),
        init_layer(k3, HID_FEATS, OUT_FEATS),
    )

    ref = reference_forward(a_norm, x, params)

    # 1) Fully-resident fused f32 path (auto-selected at this size).
    prep = prepare_rgcn(a_norm, params, compute_dtype=jnp.float32)
    out = jax.block_until_ready(rgcn_forward(prep, x))
    assert out.shape == (N, OUT_FEATS)
    assert jnp.allclose(out, ref, atol=1e-3, rtol=1e-3), "fused f32 mismatch vs ref"

    # 2) Row-tiled large-N path, forced here to exercise it at a small size.
    out_t = jax.block_until_ready(rgcn_forward(prep, x, tiled=True, tm_target=32))
    assert jnp.allclose(out_t, ref, atol=1e-3, rtol=1e-3), "tiled f32 mismatch vs ref"

    # 3) bf16 compute path (A/W/H bf16, f32 accumulation) — looser tolerance.
    prep_bf16 = prepare_rgcn(a_norm, params, compute_dtype=jnp.bfloat16)
    out_b = jax.block_until_ready(rgcn_forward(prep_bf16, x))
    rel_err = jnp.max(jnp.abs(out_b - ref)) / (jnp.max(jnp.abs(ref)) + 1e-6)
    assert rel_err < 0.08, f"bf16 path relative error too large: {rel_err}"

    print("KERNEL_OK")
</pallas_src>

<mosaic_0001>
module attributes {stable_mosaic.version = 11 : i64} {
  func.func @_rgcn3_fused_kernel(%arg0: memref<3x64x64xf32, #tpu.memory_space<vmem>>, %arg1: memref<64x128xf32, #tpu.memory_space<vmem>>, %arg2: memref<3x128x128xf32, #tpu.memory_space<vmem>>, %arg3: memref<3x128x128xf32, #tpu.memory_space<vmem>>, %arg4: memref<3x128x128xf32, #tpu.memory_space<vmem>>, %arg5: memref<1x128xf32, #tpu.memory_space<vmem>>, %arg6: memref<1x128xf32, #tpu.memory_space<vmem>>, %arg7: memref<1x128xf32, #tpu.memory_space<vmem>>, %arg8: memref<64x128xf32, #tpu.memory_space<vmem>>) attributes {dimension_semantics = [], scalar_prefetch = 0 : i64, scratch_operands = 0 : i64, tpu.core_type = #tpu.core_type<tc>} {
    %c0 = arith.constant 0 : index
    %c0_0 = arith.constant 0 : index
    %0 = vector.load %arg1[%c0, %c0_0] : memref<64x128xf32, #tpu.memory_space<vmem>>, vector<64x128xf32>
    %c0_1 = arith.constant 0 : index
    %c0_2 = arith.constant 0 : index
    %c0_3 = arith.constant 0 : index
    %1 = vector.load %arg2[%c0_1, %c0_2, %c0_3] : memref<3x128x128xf32, #tpu.memory_space<vmem>>, vector<1x128x128xf32>
    %2 = vector.shape_cast %1 : vector<1x128x128xf32> to vector<128x128xf32>
    %cst = arith.constant dense<0.000000e+00> : vector<64x128xf32>
    %3 = tpu.matmul %0, %2, %cst {dimension_numbers = #tpu.dot_dimension_numbers<[1], [0], [0], [1], [0, 0, 1, 1], [], []>} : vector<64x128xf32>, vector<128x128xf32>, vector<64x128xf32> -> vector<64x128xf32>
    %c0_4 = arith.constant 0 : index
    %c0_5 = arith.constant 0 : index
    %c0_6 = arith.constant 0 : index
    %4 = vector.load %arg0[%c0_4, %c0_5, %c0_6] : memref<3x64x64xf32, #tpu.memory_space<vmem>>, vector<1x64x64xf32>
    %5 = vector.shape_cast %4 : vector<1x64x64xf32> to vector<64x64xf32>
    %cst_7 = arith.constant dense<0.000000e+00> : vector<64x128xf32>
    %6 = tpu.matmul %5, %3, %cst_7 {dimension_numbers = #tpu.dot_dimension_numbers<[1], [0], [0], [1], [0, 0, 1, 1], [], []>} : vector<64x64xf32>, vector<64x128xf32>, vector<64x128xf32> -> vector<64x128xf32>
    %c1 = arith.constant 1 : index
    %c0_8 = arith.constant 0 : index
    %c0_9 = arith.constant 0 : index
    %7 = vector.load %arg2[%c1, %c0_8, %c0_9] : memref<3x128x128xf32, #tpu.memory_space<vmem>>, vector<1x128x128xf32>
    %8 = vector.shape_cast %7 : vector<1x128x128xf32> to vector<128x128xf32>
    %cst_10 = arith.constant dense<0.000000e+00> : vector<64x128xf32>
    %9 = tpu.matmul %0, %8, %cst_10 {dimension_numbers = #tpu.dot_dimension_numbers<[1], [0], [0], [1], [0, 0, 1, 1], [], []>} : vector<64x128xf32>, vector<128x128xf32>, vector<64x128xf32> -> vector<64x128xf32>
    %c1_11 = arith.constant 1 : index
    %c0_12 = arith.constant 0 : index
    %c0_13 = arith.constant 0 : index
    %10 = vector.load %arg0[%c1_11, %c0_12, %c0_13] : memref<3x64x64xf32, #tpu.memory_space<vmem>>, vector<1x64x64xf32>
    %11 = vector.shape_cast %10 : vector<1x64x64xf32> to vector<64x64xf32>
    %cst_14 = arith.constant dense<0.000000e+00> : vector<64x128xf32>
    %12 = tpu.matmul %11, %9, %cst_14 {dimension_numbers = #tpu.dot_dimension_numbers<[1], [0], [0], [1], [0, 0, 1, 1], [], []>} : vector<64x64xf32>, vector<64x128xf32>, vector<64x128xf32> -> vector<64x128xf32>
    %13 = arith.addf %6, %12 : vector<64x128xf32>
    %c2 = arith.constant 2 : index
    %c0_15 = arith.constant 0 : index
    %c0_16 = arith.constant 0 : index
    %14 = vector.load %arg2[%c2, %c0_15, %c0_16] : memref<3x128x128xf32, #tpu.memory_space<vmem>>, vector<1x128x128xf32>
    %15 = vector.shape_cast %14 : vector<1x128x128xf32> to vector<128x128xf32>
    %cst_17 = arith.constant dense<0.000000e+00> : vector<64x128xf32>
    %16 = tpu.matmul %0, %15, %cst_17 {dimension_numbers = #tpu.dot_dimension_numbers<[1], [0], [0], [1], [0, 0, 1, 1], [], []>} : vector<64x128xf32>, vector<128x128xf32>, vector<64x128xf32> -> vector<64x128xf32>
    %c2_18 = arith.constant 2 : index
    %c0_19 = arith.constant 0 : index
    %c0_20 = arith.constant 0 : index
    %17 = vector.load %arg0[%c2_18, %c0_19, %c0_20] : memref<3x64x64xf32, #tpu.memory_space<vmem>>, vector<1x64x64xf32>
    %18 = vector.shape_cast %17 : vector<1x64x64xf32> to vector<64x64xf32>
    %cst_21 = arith.constant dense<0.000000e+00> : vector<64x128xf32>
    %19 = tpu.matmul %18, %16, %cst_21 {dimension_numbers = #tpu.dot_dimension_numbers<[1], [0], [0], [1], [0, 0, 1, 1], [], []>} : vector<64x64xf32>, vector<64x128xf32>, vector<64x128xf32> -> vector<64x128xf32>
    %20 = arith.addf %13, %19 : vector<64x128xf32>
    %c0_22 = arith.constant 0 : index
    %c0_23 = arith.constant 0 : index
    %21 = vector.load %arg5[%c0_22, %c0_23] : memref<1x128xf32, #tpu.memory_space<vmem>>, vector<1x128xf32>
    %22 = vector.broadcast %21 : vector<1x128xf32> to vector<64x128xf32>
    %23 = arith.addf %20, %22 : vector<64x128xf32>
    %cst_24 = arith.constant 0.000000e+00 : f32
    %24 = vector.broadcast %cst_24 : f32 to vector<64x128xf32>
    %25 = arith.maximumf %23, %24 : vector<64x128xf32>
    %c0_25 = arith.constant 0 : index
    %c0_26 = arith.constant 0 : index
    %c0_27 = arith.constant 0 : index
    %26 = vector.load %arg3[%c0_25, %c0_26, %c0_27] : memref<3x128x128xf32, #tpu.memory_space<vmem>>, vector<1x128x128xf32>
    %27 = vector.shape_cast %26 : vector<1x128x128xf32> to vector<128x128xf32>
    %cst_28 = arith.constant dense<0.000000e+00> : vector<64x128xf32>
    %28 = tpu.matmul %25, %27, %cst_28 {dimension_numbers = #tpu.dot_dimension_numbers<[1], [0], [0], [1], [0, 0, 1, 1], [], []>} : vector<64x128xf32>, vector<128x128xf32>, vector<64x128xf32> -> vector<64x128xf32>
    %c0_29 = arith.constant 0 : index
    %c0_30 = arith.constant 0 : index
    %c0_31 = arith.constant 0 : index
    %29 = vector.load %arg0[%c0_29, %c0_30, %c0_31] : memref<3x64x64xf32, #tpu.memory_space<vmem>>, vector<1x64x64xf32>
    %30 = vector.shape_cast %29 : vector<1x64x64xf32> to vector<64x64xf32>
    %cst_32 = arith.constant dense<0.000000e+00> : vector<64x128xf32>
    %31 = tpu.matmul %30, %28, %cst_32 {dimension_numbers = #tpu.dot_dimension_numbers<[1], [0], [0], [1], [0, 0, 1, 1], [], []>} : vector<64x64xf32>, vector<64x128xf32>, vector<64x128xf32> -> vector<64x128xf32>
    %c1_33 = arith.constant 1 : index
    %c0_34 = arith.constant 0 : index
    %c0_35 = arith.constant 0 : index
    %32 = vector.load %arg3[%c1_33, %c0_34, %c0_35] : memref<3x128x128xf32, #tpu.memory_space<vmem>>, vector<1x128x128xf32>
    %33 = vector.shape_cast %32 : vector<1x128x128xf32> to vector<128x128xf32>
    %cst_36 = arith.constant dense<0.000000e+00> : vector<64x128xf32>
    %34 = tpu.matmul %25, %33, %cst_36 {dimension_numbers = #tpu.dot_dimension_numbers<[1], [0], [0], [1], [0, 0, 1, 1], [], []>} : vector<64x128xf32>, vector<128x128xf32>, vector<64x128xf32> -> vector<64x128xf32>
    %c1_37 = arith.constant 1 : index
    %c0_38 = arith.constant 0 : index
    %c0_39 = arith.constant 0 : index
    %35 = vector.load %arg0[%c1_37, %c0_38, %c0_39] : memref<3x64x64xf32, #tpu.memory_space<vmem>>, vector<1x64x64xf32>
    %36 = vector.shape_cast %35 : vector<1x64x64xf32> to vector<64x64xf32>
    %cst_40 = arith.constant dense<0.000000e+00> : vector<64x128xf32>
    %37 = tpu.matmul %36, %34, %cst_40 {dimension_numbers = #tpu.dot_dimension_numbers<[1], [0], [0], [1], [0, 0, 1, 1], [], []>} : vector<64x64xf32>, vector<64x128xf32>, vector<64x128xf32> -> vector<64x128xf32>
    %38 = arith.addf %31, %37 : vector<64x128xf32>
    %c2_41 = arith.constant 2 : index
    %c0_42 = arith.constant 0 : index
    %c0_43 = arith.constant 0 : index
    %39 = vector.load %arg3[%c2_41, %c0_42, %c0_43] : memref<3x128x128xf32, #tpu.memory_space<vmem>>, vector<1x128x128xf32>
    %40 = vector.shape_cast %39 : vector<1x128x128xf32> to vector<128x128xf32>
    %cst_44 = arith.constant dense<0.000000e+00> : vector<64x128xf32>
    %41 = tpu.matmul %25, %40, %cst_44 {dimension_numbers = #tpu.dot_dimension_numbers<[1], [0], [0], [1], [0, 0, 1, 1], [], []>} : vector<64x128xf32>, vector<128x128xf32>, vector<64x128xf32> -> vector<64x128xf32>
    %c2_45 = arith.constant 2 : index
    %c0_46 = arith.constant 0 : index
    %c0_47 = arith.constant 0 : index
    %42 = vector.load %arg0[%c2_45, %c0_46, %c0_47] : memref<3x64x64xf32, #tpu.memory_space<vmem>>, vector<1x64x64xf32>
    %43 = vector.shape_cast %42 : vector<1x64x64xf32> to vector<64x64xf32>
    %cst_48 = arith.constant dense<0.000000e+00> : vector<64x128xf32>
    %44 = tpu.matmul %43, %41, %cst_48 {dimension_numbers = #tpu.dot_dimension_numbers<[1], [0], [0], [1], [0, 0, 1, 1], [], []>} : vector<64x64xf32>, vector<64x128xf32>, vector<64x128xf32> -> vector<64x128xf32>
    %45 = arith.addf %38, %44 : vector<64x128xf32>
    %c0_49 = arith.constant 0 : index
    %c0_50 = arith.constant 0 : index
    %46 = vector.load %arg6[%c0_49, %c0_50] : memref<1x128xf32, #tpu.memory_space<vmem>>, vector<1x128xf32>
    %47 = vector.broadcast %46 : vector<1x128xf32> to vector<64x128xf32>
    %48 = arith.addf %45, %47 : vector<64x128xf32>
    %cst_51 = arith.constant 0.000000e+00 : f32
    %49 = vector.broadcast %cst_51 : f32 to vector<64x128xf32>
    %50 = arith.maximumf %48, %49 : vector<64x128xf32>
    %c0_52 = arith.constant 0 : index
    %c0_53 = arith.constant 0 : index
    %c0_54 = arith.constant 0 : index
    %51 = vector.load %arg4[%c0_52, %c0_53, %c0_54] : memref<3x128x128xf32, #tpu.memory_space<vmem>>, vector<1x128x128xf32>
    %52 = vector.shape_cast %51 : vector<1x128x128xf32> to vector<128x128xf32>
    %cst_55 = arith.constant dense<0.000000e+00> : vector<64x128xf32>
    %53 = tpu.matmul %50, %52, %cst_55 {dimension_numbers = #tpu.dot_dimension_numbers<[1], [0], [0], [1], [0, 0, 1, 1], [], []>} : vector<64x128xf32>, vector<128x128xf32>, vector<64x128xf32> -> vector<64x128xf32>
    %c0_56 = arith.constant 0 : index
    %c0_57 = arith.constant 0 : index
    %c0_58 = arith.constant 0 : index
    %54 = vector.load %arg0[%c0_56, %c0_57, %c0_58] : memref<3x64x64xf32, #tpu.memory_space<vmem>>, vector<1x64x64xf32>
    %55 = vector.shape_cast %54 : vector<1x64x64xf32> to vector<64x64xf32>
    %cst_59 = arith.constant dense<0.000000e+00> : vector<64x128xf32>
    %56 = tpu.matmul %55, %53, %cst_59 {dimension_numbers = #tpu.dot_dimension_numbers<[1], [0], [0], [1], [0, 0, 1, 1], [], []>} : vector<64x64xf32>, vector<64x128xf32>, vector<64x128xf32> -> vector<64x128xf32>
    %c1_60 = arith.constant 1 : index
    %c0_61 = arith.constant 0 : index
    %c0_62 = arith.constant 0 : index
    %57 = vector.load %arg4[%c1_60, %c0_61, %c0_62] : memref<3x128x128xf32, #tpu.memory_space<vmem>>, vector<1x128x128xf32>
    %58 = vector.shape_cast %57 : vector<1x128x128xf32> to vector<128x128xf32>
    %cst_63 = arith.constant dense<0.000000e+00> : vector<64x128xf32>
    %59 = tpu.matmul %50, %58, %cst_63 {dimension_numbers = #tpu.dot_dimension_numbers<[1], [0], [0], [1], [0, 0, 1, 1], [], []>} : vector<64x128xf32>, vector<128x128xf32>, vector<64x128xf32> -> vector<64x128xf32>
    %c1_64 = arith.constant 1 : index
    %c0_65 = arith.constant 0 : index
    %c0_66 = arith.constant 0 : index
    %60 = vector.load %arg0[%c1_64, %c0_65, %c0_66] : memref<3x64x64xf32, #tpu.memory_space<vmem>>, vector<1x64x64xf32>
    %61 = vector.shape_cast %60 : vector<1x64x64xf32> to vector<64x64xf32>
    %cst_67 = arith.constant dense<0.000000e+00> : vector<64x128xf32>
    %62 = tpu.matmul %61, %59, %cst_67 {dimension_numbers = #tpu.dot_dimension_numbers<[1], [0], [0], [1], [0, 0, 1, 1], [], []>} : vector<64x64xf32>, vector<64x128xf32>, vector<64x128xf32> -> vector<64x128xf32>
    %63 = arith.addf %56, %62 : vector<64x128xf32>
    %c2_68 = arith.constant 2 : index
    %c0_69 = arith.constant 0 : index
    %c0_70 = arith.constant 0 : index
    %64 = vector.load %arg4[%c2_68, %c0_69, %c0_70] : memref<3x128x128xf32, #tpu.memory_space<vmem>>, vector<1x128x128xf32>
    %65 = vector.shape_cast %64 : vector<1x128x128xf32> to vector<128x128xf32>
    %cst_71 = arith.constant dense<0.000000e+00> : vector<64x128xf32>
    %66 = tpu.matmul %50, %65, %cst_71 {dimension_numbers = #tpu.dot_dimension_numbers<[1], [0], [0], [1], [0, 0, 1, 1], [], []>} : vector<64x128xf32>, vector<128x128xf32>, vector<64x128xf32> -> vector<64x128xf32>
    %c2_72 = arith.constant 2 : index
    %c0_73 = arith.constant 0 : index
    %c0_74 = arith.constant 0 : index
    %67 = vector.load %arg0[%c2_72, %c0_73, %c0_74] : memref<3x64x64xf32, #tpu.memory_space<vmem>>, vector<1x64x64xf32>
    %68 = vector.shape_cast %67 : vector<1x64x64xf32> to vector<64x64xf32>
    %cst_75 = arith.constant dense<0.000000e+00> : vector<64x128xf32>
    %69 = tpu.matmul %68, %66, %cst_75 {dimension_numbers = #tpu.dot_dimension_numbers<[1], [0], [0], [1], [0, 0, 1, 1], [], []>} : vector<64x64xf32>, vector<64x128xf32>, vector<64x128xf32> -> vector<64x128xf32>
    %70 = arith.addf %63, %69 : vector<64x128xf32>
    %c0_76 = arith.constant 0 : index
    %c0_77 = arith.constant 0 : index
    %71 = vector.load %arg7[%c0_76, %c0_77] : memref<1x128xf32, #tpu.memory_space<vmem>>, vector<1x128xf32>
    %72 = vector.broadcast %71 : vector<1x128xf32> to vector<64x128xf32>
    %73 = arith.addf %70, %72 : vector<64x128xf32>
    %c0_78 = arith.constant 0 : index
    %c0_79 = arith.constant 0 : index
    %74 = vector.load %arg8[%c0_78, %c0_79] : memref<64x128xf32, #tpu.memory_space<vmem>>, vector<64x128xf32>
    tpu.vector_store %arg8[%c0_78, %c0_79], %73 {strides = array<i32>} : memref<64x128xf32, #tpu.memory_space<vmem>>, vector<64x128xf32>,
    return
  }
}

</mosaic_0001>

<llo_original>
// kernel: tpu_custom_call.1
$region0: #{tpu_custom_call.1}
  #allocation0 [shape = 'u32[]', space=smem, size = 0x4, offset = 0x4, fixed_abs, tag = 'smem constant byte address 0x4 - core index']
  #allocation1 [shape = 'u32[144,128]{1,0:T(1,128)}', space=vmem, size = 0x12000, scoped, tag = 'internal scratch']
  %s0 = inlined_call_operand.hbm [shape: f32[3,64,64], index: 0, kind: input, shape index: {}]
  %s1 = inlined_call_operand.hbm [shape: f32[64,128], index: 1, kind: input, shape index: {}]
  %s2 = inlined_call_operand.hbm [shape: f32[3,128,128], index: 2, kind: input, shape index: {}]
  %s3 = inlined_call_operand.hbm [shape: f32[3,128,128], index: 3, kind: input, shape index: {}]
  %s4 = inlined_call_operand.hbm [shape: f32[3,128,128], index: 4, kind: input, shape index: {}]
  %s5 = inlined_call_operand.vmem [shape: f32[1,128], index: 5, kind: input, shape index: {}]
  %s6 = inlined_call_operand.vmem [shape: f32[1,128], index: 6, kind: input, shape index: {}]
  %s7 = inlined_call_operand.vmem [shape: f32[1,128], index: 7, kind: input, shape index: {}]
  %s8 = inlined_call_operand.hbm [shape: f32[64,128], index: 8, kind: output, shape index: {}]
  %s9 = sld [smem:[#allocation0]]
  $region62: #{tpu_custom_call.1} parent=0
    _
  %s11 = ssub.s32 1, %s9
  %s12 = scalar_select 0, %s11, %s9
  $region1: #{tpu_custom_call.1} parent=0
    #allocation2 [shape = 'u8[98304]{0}', space=vmem, size = 0x18000, scoped, tag = 'input window, operand 0, single buffered']
    #allocation3 [shape = 's32[1]{0}', space=sflag, size = 0x4, scoped, tag = 'scoped memory for tpu_custom_call.1']
    #allocation4 [shape = 's32[1]{0}', space=sflag, size = 0x4, scoped, tag = 'scoped memory for tpu_custom_call.1']
    #allocation5 [shape = 'u8[32768]{0}', space=vmem, size = 0x8000, scoped, tag = 'input window, operand 1, single buffered']
    #allocation6 [shape = 's32[1]{0}', space=sflag, size = 0x4, scoped, tag = 'scoped memory for tpu_custom_call.1']
    #allocation7 [shape = 'u8[196608]{0}', space=vmem, size = 0x30000, scoped, tag = 'input window, operand 2, single buffered']
    #allocation8 [shape = 'u8[196608]{0}', space=vmem, size = 0x30000, scoped, tag = 'input window, operand 3, single buffered']
    #allocation9 [shape = 's32[1]{0}', space=sflag, size = 0x4, scoped, tag = 'scoped memory for tpu_custom_call.1']
    #allocation10 [shape = 'u8[196608]{0}', space=vmem, size = 0x30000, scoped, tag = 'input window, operand 4, single buffered']
    #allocation11 [shape = 'u8[32768]{0}', space=vmem, size = 0x8000, scoped, tag = 'output window, operand 0, single buffered']
    %13 = vsyncpa [#allocation3], 0
    %14 = vsyncpa [#allocation6], 0
    %15 = vsyncpa [#allocation9], 0
    %16 = vsyncpa [#allocation4], 0
    // Predicated region
    $region2: #{tpu_custom_call.1} parent=1 // pred_check
      _
    $region3: #{tpu_custom_call.1} parent=1 // pred_check_branch
      %18 = sbr.rel (0) target = $region5
    $region4: #{tpu_custom_call.1} parent=1 // pred_region
      %s20 = ssub.s32 3072, 3072
      %21 = vsyncadd [#allocation3], %s20
      %s22 = sshll.u32 [#allocation2], 4
      %s23 = int_to_ptr.vmem [resolvable:$true] %s22
      %28 = dma.hbm_to_vmem [thread:$0]  %s0, 3072, %s23, [#allocation3], 128, 128, 8
    $region5: #{tpu_custom_call.1} parent=1 // pred_fallthru
      _
    // Predicated region
    $region6: #{tpu_custom_call.1} parent=1 // pred_check
      _
    $region7: #{tpu_custom_call.1} parent=1 // pred_check_branch
      %30 = sbr.rel (0) target = $region9
    $region8: #{tpu_custom_call.1} parent=1 // pred_region
      %s32 = ssub.s32 1024, 1024
      %33 = vsyncadd [#allocation6], %s32
      %s34 = sshll.u32 [#allocation5], 4
      %s35 = int_to_ptr.vmem [resolvable:$true] %s34
      %40 = dma.hbm_to_vmem [thread:$0]  %s1, 1024, %s35, [#allocation6], 128, 128, 8
    $region9: #{tpu_custom_call.1} parent=1 // pred_fallthru
      _
    // Predicated region
    $region10: #{tpu_custom_call.1} parent=1 // pred_check
      _
    $region11: #{tpu_custom_call.1} parent=1 // pred_check_branch
      %42 = sbr.rel (0) target = $region13
    $region12: #{tpu_custom_call.1} parent=1 // pred_region
      %s44 = ssub.s32 6144, 6144
      %45 = vsyncadd [#allocation6], %s44
      %s46 = sshll.u32 [#allocation7], 4
      %s47 = int_to_ptr.vmem [resolvable:$true] %s46
      %52 = dma.hbm_to_vmem [thread:$0]  %s2, 6144, %s47, [#allocation6], 128, 128, 8
    $region13: #{tpu_custom_call.1} parent=1 // pred_fallthru
      _
    // Predicated region
    $region14: #{tpu_custom_call.1} parent=1 // pred_check
      _
    $region15: #{tpu_custom_call.1} parent=1 // pred_check_branch
      %54 = sbr.rel (0) target = $region17
    $region16: #{tpu_custom_call.1} parent=1 // pred_region
      %s56 = ssub.s32 6144, 6144
      %57 = vsyncadd [#allocation9], %s56
      %s58 = sshll.u32 [#allocation8], 4
      %s59 = int_to_ptr.vmem [resolvable:$true] %s58
      %64 = dma.hbm_to_vmem [thread:$0]  %s3, 6144, %s59, [#allocation9], 128, 128, 8
    $region17: #{tpu_custom_call.1} parent=1 // pred_fallthru
      _
    // Predicated region
    $region18: #{tpu_custom_call.1} parent=1 // pred_check
      _
    $region19: #{tpu_custom_call.1} parent=1 // pred_check_branch
      %66 = sbr.rel (0) target = $region21
    $region20: #{tpu_custom_call.1} parent=1 // pred_region
      %s68 = ssub.s32 6144, 6144
      %69 = vsyncadd [#allocation9], %s68
      %s70 = sshll.u32 [#allocation10], 4
      %s71 = int_to_ptr.vmem [resolvable:$true] %s70
      %76 = dma.hbm_to_vmem [thread:$0]  %s4, 6144, %s71, [#allocation9], 128, 128, 8
    $region21: #{tpu_custom_call.1} parent=1 // pred_fallthru
      _
    // Predicated region
    $region22: #{tpu_custom_call.1} parent=1 // pred_check
      _
    $region23: #{tpu_custom_call.1} parent=1 // pred_check_branch
      %78 = sbr.rel (0) target = $region25
    $region24: #{tpu_custom_call.1} parent=1 // pred_region
      _
    $region25: #{tpu_custom_call.1} parent=1 // pred_fallthru
      _
    // Predicated region
    $region26: #{tpu_custom_call.1} parent=1 // pred_check
      _
    $region27: #{tpu_custom_call.1} parent=1 // pred_check_branch
      %80 = sbr.rel (0) target = $region29
    $region28: #{tpu_custom_call.1} parent=1 // pred_region
      _
    $region29: #{tpu_custom_call.1} parent=1 // pred_fallthru
      _
    // Predicated region
    $region30: #{tpu_custom_call.1} parent=1 // pred_check
      _
    $region31: #{tpu_custom_call.1} parent=1 // pred_check_branch
      %82 = sbr.rel (0) target = $region33
    $region32: #{tpu_custom_call.1} parent=1 // pred_region
      _
    $region33: #{tpu_custom_call.1} parent=1 // pred_fallthru
      _
    // Predicated region
    $region34: #{tpu_custom_call.1} parent=1 // pred_check
      _
    $region35: #{tpu_custom_call.1} parent=1 // pred_check_branch
      %84 = sbr.rel (0) target = $region37
    $region36: #{tpu_custom_call.1} parent=1 // pred_region
      %85 = dma.done [#allocation3], 3072
    $region37: #{tpu_custom_call.1} parent=1 // pred_fallthru
      _
    // Predicated region
    $region38: #{tpu_custom_call.1} parent=1 // pred_check
      _
    $region39: #{tpu_custom_call.1} parent=1 // pred_check_branch
      %87 = sbr.rel (0) target = $region41
    $region40: #{tpu_custom_call.1} parent=1 // pred_region
      %88 = dma.done [#allocation6], 1024
    $region41: #{tpu_custom_call.1} parent=1 // pred_fallthru
      _
    // Predicated region
    $region42: #{tpu_custom_call.1} parent=1 // pred_check
      _
    $region43: #{tpu_custom_call.1} parent=1 // pred_check_branch
      %90 = sbr.rel (0) target = $region45
    $region44: #{tpu_custom_call.1} parent=1 // pred_region
      %91 = dma.done [#allocation6], 6144
    $region45: #{tpu_custom_call.1} parent=1 // pred_fallthru
      _
    // Predicated region
    $region46: #{tpu_custom_call.1} parent=1 // pred_check
      _
    $region47: #{tpu_custom_call.1} parent=1 // pred_check_branch
      %93 = sbr.rel (0) target = $region49
    $region48: #{tpu_custom_call.1} parent=1 // pred_region
      %94 = dma.done [#allocation9], 6144
    $region49: #{tpu_custom_call.1} parent=1 // pred_fallthru
      _
    // Predicated region
    $region50: #{tpu_custom_call.1} parent=1 // pred_check
      _
    $region51: #{tpu_custom_call.1} parent=1 // pred_check_branch
      %96 = sbr.rel (0) target = $region53
    $region52: #{tpu_custom_call.1} parent=1 // pred_region
      %97 = dma.done [#allocation9], 6144
    $region53: #{tpu_custom_call.1} parent=1 // pred_fallthru
      _
    %v98 = vld [vmem:[#allocation5] sm:$0xff]
    %v99 = vld [vmem:[#allocation5 + $0x8] sm:$0xff]
    %v100 = vld [vmem:[#allocation5 + $0x10] sm:$0xff]
    %v101 = vld [vmem:[#allocation5 + $0x18] sm:$0xff]
    %v102 = vld [vmem:[#allocation5 + $0x20] sm:$0xff]
    %v103 = vld [vmem:[#allocation5 + $0x28] sm:$0xff]
    %v104 = vld [vmem:[#allocation5 + $0x30] sm:$0xff]
    %v105 = vld [vmem:[#allocation5 + $0x38] sm:$0xff]
    %v106 = vld [vmem:[#allocation7] sm:$0xff]
    %v107 = vld [vmem:[#allocation7 + $0x8] sm:$0xff]
    %v108 = vld [vmem:[#allocation7 + $0x10] sm:$0xff]
    %v109 = vld [vmem:[#allocation7 + $0x18] sm:$0xff]
    %v110 = vld [vmem:[#allocation7 + $0x20] sm:$0xff]
    %v111 = vld [vmem:[#allocation7 + $0x28] sm:$0xff]
    %v112 = vld [vmem:[#allocation7 + $0x30] sm:$0xff]
    %v113 = vld [vmem:[#allocation7 + $0x38] sm:$0xff]
    %v114 = vld [vmem:[#allocation7 + $0x40] sm:$0xff]
    %v115 = vld [vmem:[#allocation7 + $0x48] sm:$0xff]
    %v116 = vld [vmem:[#allocation7 + $0x50] sm:$0xff]
    %v117 = vld [vmem:[#allocation7 + $0x58] sm:$0xff]
    %v118 = vld [vmem:[#allocation7 + $0x60] sm:$0xff]
    %v119 = vld [vmem:[#allocation7 + $0x68] sm:$0xff]
    %v120 = vld [vmem:[#allocation7 + $0x70] sm:$0xff]
    %v121 = vld [vmem:[#allocation7 + $0x78] sm:$0xff]
    %122 = vmatprep.subr.mxu0 0.0
    %123 = vmatpush1.msra.mxu0 %v106
    %124 = vmatprep.subr.mxu0 0.0
    %125 = vmatpush1.msra.mxu0 %v107
    %126 = vmatprep.subr.mxu0 0.0
    %127 = vmatpush1.msra.mxu0 %v108
    %128 = vmatprep.subr.mxu0 0.0
    %129 = vmatpush1.msra.mxu0 %v109
    %130 = vmatprep.subr.mxu0 0.0
    %131 = vmatpush1.msra.mxu0 %v110
    %132 = vmatprep.subr.mxu0 0.0
    %133 = vmatpush1.msra.mxu0 %v111
    %134 = vmatprep.subr.mxu0 0.0
    %135 = vmatpush1.msra.mxu0 %v112
    %136 = vmatprep.subr.mxu0 0.0
    %137 = vmatpush1.msra.mxu0 %v113
    %138 = vmatprep.subr.mxu0 0.0
    %139 = vmatpush1.msra.mxu0 %v114
    %140 = vmatprep.subr.mxu0 0.0
    %141 = vmatpush1.msra.mxu0 %v115
    %142 = vmatprep.subr.mxu0 0.0
    %143 = vmatpush1.msra.mxu0 %v116
    %144 = vmatprep.subr.mxu0 0.0
    %145 = vmatpush1.msra.mxu0 %v117
    %146 = vmatprep.subr.mxu0 0.0
    %147 = vmatpush1.msra.mxu0 %v118
    %148 = vmatprep.subr.mxu0 0.0
    %149 = vmatpush1.msra.mxu0 %v119
    %150 = vmatprep.subr.mxu0 0.0
    %151 = vmatpush1.msra.mxu0 %v120
    %152 = vmatprep.subr.mxu0 0.0
    %153 = vmatpush1.msra.mxu0 %v121
    %154 = vmatprep.subr.mxu0 0.0
    %155 = vmatpush1.msra.mxu0 0.0
    %156 = vmatprep.subr.mxu0 0.0
    %157 = vmatpush1.msra.mxu0 0.0
    %158 = vmatprep.subr.mxu0 0.0
    %159 = vmatpush1.msra.mxu0 0.0
    %160 = vmatprep.subr.mxu0 0.0
    %161 = vmatpush1.msra.mxu0 0.0
    %162 = vmatprep.subr.mxu0 0.0
    %163 = vmatpush1.msra.mxu0 0.0
    %164 = vmatprep.subr.mxu0 0.0
    %165 = vmatpush1.msra.mxu0 0.0
    %166 = vmatprep.subr.mxu0 0.0
    %167 = vmatpush1.msra.mxu0 0.0
    %168 = vmatprep.subr.mxu0 0.0
    %169 = vmatpush1.msra.mxu0 0.0
    %170 = vmatprep.subr.mxu0 0.0
    %171 = vmatpush1.msra.mxu0 0.0
    %172 = vmatprep.subr.mxu0 0.0
    %173 = vmatpush1.msra.mxu0 0.0
    %174 = vmatprep.subr.mxu0 0.0
    %175 = vmatpush1.msra.mxu0 0.0
    %176 = vmatprep.subr.mxu0 0.0
    %177 = vmatpush1.msra.mxu0 0.0
    %178 = vmatprep.subr.mxu0 0.0
    %179 = vmatpush1.msra.mxu0 0.0
    %180 = vmatprep.subr.mxu0 0.0
    %181 = vmatpush1.msra.mxu0 0.0
    %182 = vmatprep.subr.mxu0 0.0
    %183 = vmatpush1.msra.mxu0 0.0
    %184 = vmatprep.subr.mxu0 0.0
    %185 = vmatpush1.msra.mxu0 0.0
    %186 = vmatprep.mubr.f32.mxu0 0.0
    %187 = vmatmul.mubr.f32.gmra.mrb[0].mxu0 %v98
    %v188 = vpop.f32.mrb[0].mxu0
    %v189 = vadd.f32 0.0, %v188
    %v190 = vpop.f32.mrb[0].mxu0
    %191 = vmatprep.mubr.f32.mxu0 0.0
    %192 = vmatmul.mubr.f32.gmra.mrb[0].mxu0 %v99
    %v193 = vpop.f32.mrb[0].mxu0
    %v194 = vadd.f32 0.0, %v193
    %v195 = vpop.f32.mrb[0].mxu0
    %196 = vmatprep.mubr.f32.mxu0 0.0
    %197 = vmatmul.mubr.f32.gmra.mrb[0].mxu0 %v100
    %v198 = vpop.f32.mrb[0].mxu0
    %v199 = vadd.f32 0.0, %v198
    %v200 = vpop.f32.mrb[0].mxu0
    %201 = vmatprep.mubr.f32.mxu0 0.0
    %202 = vmatmul.mubr.f32.gmra.mrb[0].mxu0 %v101
    %v203 = vpop.f32.mrb[0].mxu0
    %v204 = vadd.f32 0.0, %v203
    %v205 = vpop.f32.mrb[0].mxu0
    %206 = vmatprep.mubr.f32.mxu0 0.0
    %207 = vmatmul.mubr.f32.gmra.mrb[0].mxu0 %v102
    %v208 = vpop.f32.mrb[0].mxu0
    %v209 = vadd.f32 0.0, %v208
    %v210 = vpop.f32.mrb[0].mxu0
    %211 = vmatprep.mubr.f32.mxu0 0.0
    %212 = vmatmul.mubr.f32.gmra.mrb[0].mxu0 %v103
    %v213 = vpop.f32.mrb[0].mxu0
    %v214 = vadd.f32 0.0, %v213
    %v215 = vpop.f32.mrb[0].mxu0
    %216 = vmatprep.mubr.f32.mxu0 0.0
    %217 = vmatmul.mubr.f32.gmra.mrb[0].mxu0 %v104
    %v218 = vpop.f32.mrb[0].mxu0
    %v219 = vadd.f32 0.0, %v218
    %v220 = vpop.f32.mrb[0].mxu0
    %221 = vmatprep.mubr.f32.mxu0 0.0
    %222 = vmatmul.mubr.f32.gmra.mrb[0].mxu0 %v105
    %v223 = vpop.f32.mrb[0].mxu0
    %v224 = vadd.f32 0.0, %v223
    %v225 = vpop.f32.mrb[0].mxu0
    %226 = vdwg.mxu0
    %v227 = vld [vmem:[#allocation2] sm:$0xff]
    %v228 = vld [vmem:[#allocation2 + $0x8] sm:$0xff]
    %v229 = vld [vmem:[#allocation2 + $0x10] sm:$0xff]
    %v230 = vld [vmem:[#allocation2 + $0x18] sm:$0xff]
    %v231 = vld [vmem:[#allocation2 + $0x20] sm:$0xff]
    %v232 = vld [vmem:[#allocation2 + $0x28] sm:$0xff]
    %v233 = vld [vmem:[#allocation2 + $0x30] sm:$0xff]
    %v234 = vld [vmem:[#allocation2 + $0x38] sm:$0xff]
    %s235 = scalar_lea.vmem [#allocation7], 128
    %v236 = vld [vmem:[%s235] sm:$0xff]
    %v237 = vld [vmem:[%s235 + $0x8] sm:$0xff]
    %v238 = vld [vmem:[%s235 + $0x10] sm:$0xff]
    %v239 = vld [vmem:[%s235 + $0x18] sm:$0xff]
    %v240 = vld [vmem:[%s235 + $0x20] sm:$0xff]
    %v241 = vld [vmem:[%s235 + $0x28] sm:$0xff]
    %v242 = vld [vmem:[%s235 + $0x30] sm:$0xff]
    %v243 = vld [vmem:[%s235 + $0x38] sm:$0xff]
    %v244 = vld [vmem:[%s235 + $0x40] sm:$0xff]
    %v245 = vld [vmem:[%s235 + $0x48] sm:$0xff]
    %v246 = vld [vmem:[%s235 + $0x50] sm:$0xff]
    %v247 = vld [vmem:[%s235 + $0x58] sm:$0xff]
    %v248 = vld [vmem:[%s235 + $0x60] sm:$0xff]
    %v249 = vld [vmem:[%s235 + $0x68] sm:$0xff]
    %v250 = vld [vmem:[%s235 + $0x70] sm:$0xff]
    %v251 = vld [vmem:[%s235 + $0x78] sm:$0xff]
    %252 = vmatprep.subr.mxu0 0.0
    %253 = vmatpush1.msra.mxu0 %v236
    %254 = vmatprep.subr.mxu0 0.0
    %255 = vmatpush1.msra.mxu0 %v237
    %256 = vmatprep.subr.mxu0 0.0
    %257 = vmatpush1.msra.mxu0 %v238
    %258 = vmatprep.subr.mxu0 0.0
    %259 = vmatpush1.msra.mxu0 %v239
    %260 = vmatprep.subr.mxu0 0.0
    %261 = vmatpush1.msra.mxu0 %v240
    %262 = vmatprep.subr.mxu0 0.0
    %263 = vmatpush1.msra.mxu0 %v241
    %264 = vmatprep.subr.mxu0 0.0
    %265 = vmatpush1.msra.mxu0 %v242
    %266 = vmatprep.subr.mxu0 0.0
    %267 = vmatpush1.msra.mxu0 %v243
    %268 = vmatprep.subr.mxu0 0.0
    %269 = vmatpush1.msra.mxu0 %v244
    %270 = vmatprep.subr.mxu0 0.0
    %271 = vmatpush1.msra.mxu0 %v245
    %272 = vmatprep.subr.mxu0 0.0
    %273 = vmatpush1.msra.mxu0 %v246
    %274 = vmatprep.subr.mxu0 0.0
    %275 = vmatpush1.msra.mxu0 %v247
    %276 = vmatprep.subr.mxu0 0.0
    %277 = vmatpush1.msra.mxu0 %v248
    %278 = vmatprep.subr.mxu0 0.0
    %279 = vmatpush1.msra.mxu0 %v249
    %280 = vmatprep.subr.mxu0 0.0
    %281 = vmatpush1.msra.mxu0 %v250
    %282 = vmatprep.subr.mxu0 0.0
    %283 = vmatpush1.msra.mxu0 %v251
    %284 = vmatprep.subr.mxu0 0.0
    %285 = vmatpush1.msra.mxu0 0.0
    %286 = vmatprep.subr.mxu0 0.0
    %287 = vmatpush1.msra.mxu0 0.0
    %288 = vmatprep.subr.mxu0 0.0
    %289 = vmatpush1.msra.mxu0 0.0
    %290 = vmatprep.subr.mxu0 0.0
    %291 = vmatpush1.msra.mxu0 0.0
    %292 = vmatprep.subr.mxu0 0.0
    %293 = vmatpush1.msra.mxu0 0.0
    %294 = vmatprep.subr.mxu0 0.0
    %295 = vmatpush1.msra.mxu0 0.0
    %296 = vmatprep.subr.mxu0 0.0
    %297 = vmatpush1.msra.mxu0 0.0
    %298 = vmatprep.subr.mxu0 0.0
    %299 = vmatpush1.msra.mxu0 0.0
    %300 = vmatprep.subr.mxu0 0.0
    %301 = vmatpush1.msra.mxu0 0.0
    %302 = vmatprep.subr.mxu0 0.0
    %303 = vmatpush1.msra.mxu0 0.0
    %304 = vmatprep.subr.mxu0 0.0
    %305 = vmatpush1.msra.mxu0 0.0
    %306 = vmatprep.subr.mxu0 0.0
    %307 = vmatpush1.msra.mxu0 0.0
    %308 = vmatprep.subr.mxu0 0.0
    %309 = vmatpush1.msra.mxu0 0.0
    %310 = vmatprep.subr.mxu0 0.0
    %311 = vmatpush1.msra.mxu0 0.0
    %312 = vmatprep.subr.mxu0 0.0
    %313 = vmatpush1.msra.mxu0 0.0
    %314 = vmatprep.subr.mxu0 0.0
    %315 = vmatpush1.msra.mxu0 0.0
    %316 = vmatprep.mubr.f32.mxu0 0.0
    %317 = vmatmul.mubr.f32.gmra.mrb[0].mxu0 %v98
    %v318 = vpop.f32.mrb[0].mxu0
    %v319 = vadd.f32 0.0, %v318
    %v320 = vpop.f32.mrb[0].mxu0
    %321 = vmatprep.mubr.f32.mxu0 0.0
    %322 = vmatmul.mubr.f32.gmra.mrb[0].mxu0 %v99
    %v323 = vpop.f32.mrb[0].mxu0
    %v324 = vadd.f32 0.0, %v323
    %v325 = vpop.f32.mrb[0].mxu0
    %326 = vmatprep.mubr.f32.mxu0 0.0
    %327 = vmatmul.mubr.f32.gmra.mrb[0].mxu0 %v100
    %v328 = vpop.f32.mrb[0].mxu0
    %v329 = vadd.f32 0.0, %v328
    %v330 = vpop.f32.mrb[0].mxu0
    %331 = vmatprep.mubr.f32.mxu0 0.0
    %332 = vmatmul.mubr.f32.gmra.mrb[0].mxu0 %v101
    %v333 = vpop.f32.mrb[0].mxu0
    %v334 = vadd.f32 0.0, %v333
    %v335 = vpop.f32.mrb[0].mxu0
    %336 = vmatprep.mubr.f32.mxu0 0.0
    %337 = vmatmul.mubr.f32.gmra.mrb[0].mxu0 %v102
    %v338 = vpop.f32.mrb[0].mxu0
    %v339 = vadd.f32 0.0, %v338
    %v340 = vpop.f32.mrb[0].mxu0
    %341 = vmatprep.mubr.f32.mxu0 0.0
    %342 = vmatmul.mubr.f32.gmra.mrb[0].mxu0 %v103
    %v343 = vpop.f32.mrb[0].mxu0
    %v344 = vadd.f32 0.0, %v343
    %v345 = vpop.f32.mrb[0].mxu0
    %346 = vmatprep.mubr.f32.mxu0 0.0
    %347 = vmatmul.mubr.f32.gmra.mrb[0].mxu0 %v104
    %v348 = vpop.f32.mrb[0].mxu0
    %v349 = vadd.f32 0.0, %v348
    %v350 = vpop.f32.mrb[0].mxu0
    %351 = vmatprep.mubr.f32.mxu0 0.0
    %352 = vmatmul.mubr.f32.gmra.mrb[0].mxu0 %v105
    %v353 = vpop.f32.mrb[0].mxu0
    %v354 = vadd.f32 0.0, %v353
    %v355 = vpop.f32.mrb[0].mxu0
    %356 = vdwg.mxu0
    %s357 = scalar_lea.vmem [#allocation2], 64
    %v358 = vld [vmem:[%s357] sm:$0xff]
    %v359 = vld [vmem:[%s357 + $0x8] sm:$0xff]
    %v360 = vld [vmem:[%s357 + $0x10] sm:$0xff]
    %v361 = vld [vmem:[%s357 + $0x18] sm:$0xff]
    %v362 = vld [vmem:[%s357 + $0x20] sm:$0xff]
    %v363 = vld [vmem:[%s357 + $0x28] sm:$0xff]
    %v364 = vld [vmem:[%s357 + $0x30] sm:$0xff]
    %v365 = vld [vmem:[%s357 + $0x38] sm:$0xff]
    %vm366 = vcmask 523264
    %v368 = vsel %vm366, %v358, 0
    %v371 = vsel %vm366, %v359, 0
    %v374 = vsel %vm366, %v360, 0
    %v377 = vsel %vm366, %v361, 0
    %v380 = vsel %vm366, %v362, 0
    %v383 = vsel %vm366, %v363, 0
    %v386 = vsel %vm366, %v364, 0
    %v389 = vsel %vm366, %v365, 0
    %391 = vmatprep.subr.mxu0 0.0
    %392 = vmatpush1.msra.mxu0 %v319
    %393 = vmatprep.subr.mxu0 0.0
    %394 = vmatpush1.msra.mxu0 %v324
    %395 = vmatprep.subr.mxu0 0.0
    %396 = vmatpush1.msra.mxu0 %v329
    %397 = vmatprep.subr.mxu0 0.0
    %398 = vmatpush1.msra.mxu0 %v334
    %399 = vmatprep.subr.mxu0 0.0
    %400 = vmatpush1.msra.mxu0 %v339
    %401 = vmatprep.subr.mxu0 0.0
    %402 = vmatpush1.msra.mxu0 %v344
    %403 = vmatprep.subr.mxu0 0.0
    %404 = vmatpush1.msra.mxu0 %v349
    %405 = vmatprep.subr.mxu0 0.0
    %406 = vmatpush1.msra.mxu0 %v354
    %407 = vmatprep.subr.mxu0 0.0
    %408 = vmatpush1.msra.mxu0 0.0
    %409 = vmatprep.subr.mxu0 0.0
    %410 = vmatpush1.msra.mxu0 0.0
    %411 = vmatprep.subr.mxu0 0.0
    %412 = vmatpush1.msra.mxu0 0.0
    %413 = vmatprep.subr.mxu0 0.0
    %414 = vmatpush1.msra.mxu0 0.0
    %415 = vmatprep.subr.mxu0 0.0
    %416 = vmatpush1.msra.mxu0 0.0
    %417 = vmatprep.subr.mxu0 0.0
    %418 = vmatpush1.msra.mxu0 0.0
    %419 = vmatprep.subr.mxu0 0.0
    %420 = vmatpush1.msra.mxu0 0.0
    %421 = vmatprep.subr.mxu0 0.0
    %422 = vmatpush1.msra.mxu0 0.0
    %423 = vmatprep.subr.mxu0 0.0
    %424 = vmatpush1.msra.mxu0 0.0
    %425 = vmatprep.subr.mxu0 0.0
    %426 = vmatpush1.msra.mxu0 0.0
    %427 = vmatprep.subr.mxu0 0.0
    %428 = vmatpush1.msra.mxu0 0.0
    %429 = vmatprep.subr.mxu0 0.0
    %430 = vmatpush1.msra.mxu0 0.0
    %431 = vmatprep.subr.mxu0 0.0
    %432 = vmatpush1.msra.mxu0 0.0
    %433 = vmatprep.subr.mxu0 0.0
    %434 = vmatpush1.msra.mxu0 0.0
    %435 = vmatprep.subr.mxu0 0.0
    %436 = vmatpush1.msra.mxu0 0.0
    %437 = vmatprep.subr.mxu0 0.0
    %438 = vmatpush1.msra.mxu0 0.0
    %439 = vmatprep.subr.mxu0 0.0
    %440 = vmatpush1.msra.mxu0 0.0
    %441 = vmatprep.subr.mxu0 0.0
    %442 = vmatpush1.msra.mxu0 0.0
    %443 = vmatprep.subr.mxu0 0.0
    %444 = vmatpush1.msra.mxu0 0.0
    %445 = vmatprep.subr.mxu0 0.0
    %446 = vmatpush1.msra.mxu0 0.0
    %447 = vmatprep.subr.mxu0 0.0
    %448 = vmatpush1.msra.mxu0 0.0
    %449 = vmatprep.subr.mxu0 0.0
    %450 = vmatpush1.msra.mxu0 0.0
    %451 = vmatprep.subr.mxu0 0.0
    %452 = vmatpush1.msra.mxu0 0.0
    %453 = vmatprep.subr.mxu0 0.0
    %454 = vmatpush1.msra.mxu0 0.0
    %455 = vmatprep.mubr.f32.mxu0 0.0
    %456 = vmatmul.mubr.f32.gmra.mrb[0].mxu0 %v368
    %v457 = vpop.f32.mrb[0].mxu0
    %v458 = vadd.f32 0.0, %v457
    %v459 = vpop.f32.mrb[0].mxu0
    %460 = vmatprep.mubr.f32.mxu0 0.0
    %461 = vmatmul.mubr.f32.gmra.mrb[0].mxu0 %v371
    %v462 = vpop.f32.mrb[0].mxu0
    %v463 = vadd.f32 0.0, %v462
    %v464 = vpop.f32.mrb[0].mxu0
    %465 = vmatprep.mubr.f32.mxu0 0.0
    %466 = vmatmul.mubr.f32.gmra.mrb[0].mxu0 %v374
    %v467 = vpop.f32.mrb[0].mxu0
    %v468 = vadd.f32 0.0, %v467
    %v469 = vpop.f32.mrb[0].mxu0
    %470 = vmatprep.mubr.f32.mxu0 0.0
    %471 = vmatmul.mubr.f32.gmra.mrb[0].mxu0 %v377
    %v472 = vpop.f32.mrb[0].mxu0
    %v473 = vadd.f32 0.0, %v472
    %v474 = vpop.f32.mrb[0].mxu0
    %475 = vmatprep.mubr.f32.mxu0 0.0
    %476 = vmatmul.mubr.f32.gmra.mrb[0].mxu0 %v380
    %v477 = vpop.f32.mrb[0].mxu0
    %v478 = vadd.f32 0.0, %v477
    %v479 = vpop.f32.mrb[0].mxu0
    %480 = vmatprep.mubr.f32.mxu0 0.0
    %481 = vmatmul.mubr.f32.gmra.mrb[0].mxu0 %v383
    %v482 = vpop.f32.mrb[0].mxu0
    %v483 = vadd.f32 0.0, %v482
    %v484 = vpop.f32.mrb[0].mxu0
    %485 = vmatprep.mubr.f32.mxu0 0.0
    %486 = vmatmul.mubr.f32.gmra.mrb[0].mxu0 %v386
    %v487 = vpop.f32.mrb[0].mxu0
    %v488 = vadd.f32 0.0, %v487
    %v489 = vpop.f32.mrb[0].mxu0
    %490 = vmatprep.mubr.f32.mxu0 0.0
    %491 = vmatmul.mubr.f32.gmra.mrb[0].mxu0 %v389
    %v492 = vpop.f32.mrb[0].mxu0
    %v493 = vadd.f32 0.0, %v492
    %v494 = vpop.f32.mrb[0].mxu0
    %495 = vdwg.mxu0
    %v497 = vsel %vm366, %v227, 0
    %v500 = vsel %vm366, %v228, 0
    %v503 = vsel %vm366, %v229, 0
    %v506 = vsel %vm366, %v230, 0
    %v509 = vsel %vm366, %v231, 0
    %v512 = vsel %vm366, %v232, 0
    %v515 = vsel %vm366, %v233, 0
    %v518 = vsel %vm366, %v234, 0
    %520 = vmatprep.subr.mxu0 0.0
    %521 = vmatpush1.msra.mxu0 %v189
    %522 = vmatprep.subr.mxu0 0.0
    %523 = vmatpush1.msra.mxu0 %v194
    %524 = vmatprep.subr.mxu0 0.0
    %525 = vmatpush1.msra.mxu0 %v199
    %526 = vmatprep.subr.mxu0 0.0
    %527 = vmatpush1.msra.mxu0 %v204
    %528 = vmatprep.subr.mxu0 0.0
    %529 = vmatpush1.msra.mxu0 %v209
    %530 = vmatprep.subr.mxu0 0.0
    %531 = vmatpush1.msra.mxu0 %v214
    %532 = vmatprep.subr.mxu0 0.0
    %533 = vmatpush1.msra.mxu0 %v219
    %534 = vmatprep.subr.mxu0 0.0
    %535 = vmatpush1.msra.mxu0 %v224
    %536 = vmatprep.subr.mxu0 0.0
    %537 = vmatpush1.msra.mxu0 0.0
    %538 = vmatprep.subr.mxu0 0.0
    %539 = vmatpush1.msra.mxu0 0.0
    %540 = vmatprep.subr.mxu0 0.0
    %541 = vmatpush1.msra.mxu0 0.0
    %542 = vmatprep.subr.mxu0 0.0
    %543 = vmatpush1.msra.mxu0 0.0
    %544 = vmatprep.subr.mxu0 0.0
    %545 = vmatpush1.msra.mxu0 0.0
    %546 = vmatprep.subr.mxu0 0.0
    %547 = vmatpush1.msra.mxu0 0.0
    %548 = vmatprep.subr.mxu0 0.0
    %549 = vmatpush1.msra.mxu0 0.0
    %550 = vmatprep.subr.mxu0 0.0
    %551 = vmatpush1.msra.mxu0 0.0
    %552 = vmatprep.subr.mxu0 0.0
    %553 = vmatpush1.msra.mxu0 0.0
    %554 = vmatprep.subr.mxu0 0.0
    %555 = vmatpush1.msra.mxu0 0.0
    %556 = vmatprep.subr.mxu0 0.0
    %557 = vmatpush1.msra.mxu0 0.0
    %558 = vmatprep.subr.mxu0 0.0
    %559 = vmatpush1.msra.mxu0 0.0
    %560 = vmatprep.subr.mxu0 0.0
    %561 = vmatpush1.msra.mxu0 0.0
    %562 = vmatprep.subr.mxu0 0.0
    %563 = vmatpush1.msra.mxu0 0.0
    %564 = vmatprep.subr.mxu0 0.0
    %565 = vmatpush1.msra.mxu0 0.0
    %566 = vmatprep.subr.mxu0 0.0
    %567 = vmatpush1.msra.mxu0 0.0
    %568 = vmatprep.subr.mxu0 0.0
    %569 = vmatpush1.msra.mxu0 0.0
    %570 = vmatprep.subr.mxu0 0.0
    %571 = vmatpush1.msra.mxu0 0.0
    %572 = vmatprep.subr.mxu0 0.0
    %573 = vmatpush1.msra.mxu0 0.0
    %574 = vmatprep.subr.mxu0 0.0
    %575 = vmatpush1.msra.mxu0 0.0
    %576 = vmatprep.subr.mxu0 0.0
    %577 = vmatpush1.msra.mxu0 0.0
    %578 = vmatprep.subr.mxu0 0.0
    %579 = vmatpush1.msra.mxu0 0.0
    %580 = vmatprep.subr.mxu0 0.0
    %581 = vmatpush1.msra.mxu0 0.0
    %582 = vmatprep.subr.mxu0 0.0
    %583 = vmatpush1.msra.mxu0 0.0
    %584 = vmatprep.mubr.f32.mxu0 0.0
    %585 = vmatmul.mubr.f32.gmra.mrb[0].mxu0 %v497
    %v586 = vpop.f32.mrb[0].mxu0
    %v587 = vadd.f32 %v458, %v586
    %v588 = vpop.f32.mrb[0].mxu0
    %589 = vmatprep.mubr.f32.mxu0 0.0
    %590 = vmatmul.mubr.f32.gmra.mrb[0].mxu0 %v500
    %v591 = vpop.f32.mrb[0].mxu0
    %v592 = vadd.f32 %v463, %v591
    %v593 = vpop.f32.mrb[0].mxu0
    %594 = vmatprep.mubr.f32.mxu0 0.0
    %595 = vmatmul.mubr.f32.gmra.mrb[0].mxu0 %v503
    %v596 = vpop.f32.mrb[0].mxu0
    %v597 = vadd.f32 %v468, %v596
    %v598 = vpop.f32.mrb[0].mxu0
    %599 = vmatprep.mubr.f32.mxu0 0.0
    %600 = vmatmul.mubr.f32.gmra.mrb[0].mxu0 %v506
    %v601 = vpop.f32.mrb[0].mxu0
    %v602 = vadd.f32 %v473, %v601
    %v603 = vpop.f32.mrb[0].mxu0
    %604 = vmatprep.mubr.f32.mxu0 0.0
    %605 = vmatmul.mubr.f32.gmra.mrb[0].mxu0 %v509
    %v606 = vpop.f32.mrb[0].mxu0
    %v607 = vadd.f32 %v478, %v606
    %v608 = vpop.f32.mrb[0].mxu0
    %609 = vmatprep.mubr.f32.mxu0 0.0
    %610 = vmatmul.mubr.f32.gmra.mrb[0].mxu0 %v512
    %v611 = vpop.f32.mrb[0].mxu0
    %v612 = vadd.f32 %v483, %v611
    %v613 = vpop.f32.mrb[0].mxu0
    %614 = vmatprep.mubr.f32.mxu0 0.0
    %615 = vmatmul.mubr.f32.gmra.mrb[0].mxu0 %v515
    %v616 = vpop.f32.mrb[0].mxu0
    %v617 = vadd.f32 %v488, %v616
    %v618 = vpop.f32.mrb[0].mxu0
    %619 = vmatprep.mubr.f32.mxu0 0.0
    %620 = vmatmul.mubr.f32.gmra.mrb[0].mxu0 %v518
    %v621 = vpop.f32.mrb[0].mxu0
    %v622 = vadd.f32 %v493, %v621
    %v623 = vpop.f32.mrb[0].mxu0
    %624 = vdwg.mxu0
    %s625 = scalar_lea.vmem [#allocation7], 256
    %v626 = vld [vmem:[%s625] sm:$0xff]
    %v627 = vld [vmem:[%s625 + $0x8] sm:$0xff]
    %v628 = vld [vmem:[%s625 + $0x10] sm:$0xff]
    %v629 = vld [vmem:[%s625 + $0x18] sm:$0xff]
    %v630 = vld [vmem:[%s625 + $0x20] sm:$0xff]
    %v631 = vld [vmem:[%s625 + $0x28] sm:$0xff]
    %v632 = vld [vmem:[%s625 + $0x30] sm:$0xff]
    %v633 = vld [vmem:[%s625 + $0x38] sm:$0xff]
    %v634 = vld [vmem:[%s625 + $0x40] sm:$0xff]
    %v635 = vld [vmem:[%s625 + $0x48] sm:$0xff]
    %v636 = vld [vmem:[%s625 + $0x50] sm:$0xff]
    %v637 = vld [vmem:[%s625 + $0x58] sm:$0xff]
    %v638 = vld [vmem:[%s625 + $0x60] sm:$0xff]
    %v639 = vld [vmem:[%s625 + $0x68] sm:$0xff]
    %v640 = vld [vmem:[%s625 + $0x70] sm:$0xff]
    %v641 = vld [vmem:[%s625 + $0x78] sm:$0xff]
    %642 = vmatprep.subr.mxu0 0.0
    %643 = vmatpush1.msra.mxu0 %v626
    %644 = vmatprep.subr.mxu0 0.0
    %645 = vmatpush1.msra.mxu0 %v627
    %646 = vmatprep.subr.mxu0 0.0
    %647 = vmatpush1.msra.mxu0 %v628
    %648 = vmatprep.subr.mxu0 0.0
    %649 = vmatpush1.msra.mxu0 %v629
    %650 = vmatprep.subr.mxu0 0.0
    %651 = vmatpush1.msra.mxu0 %v630
    %652 = vmatprep.subr.mxu0 0.0
    %653 = vmatpush1.msra.mxu0 %v631
    %654 = vmatprep.subr.mxu0 0.0
    %655 = vmatpush1.msra.mxu0 %v632
    %656 = vmatprep.subr.mxu0 0.0
    %657 = vmatpush1.msra.mxu0 %v633
    %658 = vmatprep.subr.mxu0 0.0
    %659 = vmatpush1.msra.mxu0 %v634
    %660 = vmatprep.subr.mxu0 0.0
    %661 = vmatpush1.msra.mxu0 %v635
    %662 = vmatprep.subr.mxu0 0.0
    %663 = vmatpush1.msra.mxu0 %v636
    %664 = vmatprep.subr.mxu0 0.0
    %665 = vmatpush1.msra.mxu0 %v637
    %666 = vmatprep.subr.mxu0 0.0
    %667 = vmatpush1.msra.mxu0 %v638
    %668 = vmatprep.subr.mxu0 0.0
    %669 = vmatpush1.msra.mxu0 %v639
    %670 = vmatprep.subr.mxu0 0.0
    %671 = vmatpush1.msra.mxu0 %v640
    %672 = vmatprep.subr.mxu0 0.0
    %673 = vmatpush1.msra.mxu0 %v641
    %674 = vmatprep.subr.mxu0 0.0
    %675 = vmatpush1.msra.mxu0 0.0
    %676 = vmatprep.subr.mxu0 0.0
    %677 = vmatpush1.msra.mxu0 0.0
    %678 = vmatprep.subr.mxu0 0.0
    %679 = vmatpush1.msra.mxu0 0.0
    %680 = vmatprep.subr.mxu0 0.0
    %681 = vmatpush1.msra.mxu0 0.0
    %682 = vmatprep.subr.mxu0 0.0
    %683 = vmatpush1.msra.mxu0 0.0
    %684 = vmatprep.subr.mxu0 0.0
    %685 = vmatpush1.msra.mxu0 0.0
    %686 = vmatprep.subr.mxu0 0.0
    %687 = vmatpush1.msra.mxu0 0.0
    %688 = vmatprep.subr.mxu0 0.0
    %689 = vmatpush1.msra.mxu0 0.0
    %690 = vmatprep.subr.mxu0 0.0
    %691 = vmatpush1.msra.mxu0 0.0
    %692 = vmatprep.subr.mxu0 0.0
    %693 = vmatpush1.msra.mxu0 0.0
    %694 = vmatprep.subr.mxu0 0.0
    %695 = vmatpush1.msra.mxu0 0.0
    %696 = vmatprep.subr.mxu0 0.0
    %697 = vmatpush1.msra.mxu0 0.0
    %698 = vmatprep.subr.mxu0 0.0
    %699 = vmatpush1.msra.mxu0 0.0
    %700 = vmatprep.subr.mxu0 0.0
    %701 = vmatpush1.msra.mxu0 0.0
    %702 = vmatprep.subr.mxu0 0.0
    %703 = vmatpush1.msra.mxu0 0.0
    %704 = vmatprep.subr.mxu0 0.0
    %705 = vmatpush1.msra.mxu0 0.0
    %706 = vmatprep.mubr.f32.mxu0 0.0
    %707 = vmatmul.mubr.f32.gmra.mrb[0].mxu0 %v98
    %v708 = vpop.f32.mrb[0].mxu0
    %v709 = vadd.f32 0.0, %v708
    %v710 = vpop.f32.mrb[0].mxu0
    %711 = vmatprep.mubr.f32.mxu0 0.0
    %712 = vmatmul.mubr.f32.gmra.mrb[0].mxu0 %v99
    %v713 = vpop.f32.mrb[0].mxu0
    %v714 = vadd.f32 0.0, %v713
    %v715 = vpop.f32.mrb[0].mxu0
    %716 = vmatprep.mubr.f32.mxu0 0.0
    %717 = vmatmul.mubr.f32.gmra.mrb[0].mxu0 %v100
    %v718 = vpop.f32.mrb[0].mxu0
    %v719 = vadd.f32 0.0, %v718
    %v720 = vpop.f32.mrb[0].mxu0
    %721 = vmatprep.mubr.f32.mxu0 0.0
    %722 = vmatmul.mubr.f32.gmra.mrb[0].mxu0 %v101
    %v723 = vpop.f32.mrb[0].mxu0
    %v724 = vadd.f32 0.0, %v723
    %v725 = vpop.f32.mrb[0].mxu0
    %726 = vmatprep.mubr.f32.mxu0 0.0
    %727 = vmatmul.mubr.f32.gmra.mrb[0].mxu0 %v102
    %v728 = vpop.f32.mrb[0].mxu0
    %v729 = vadd.f32 0.0, %v728
    %v730 = vpop.f32.mrb[0].mxu0
    %731 = vmatprep.mubr.f32.mxu0 0.0
    %732 = vmatmul.mubr.f32.gmra.mrb[0].mxu0 %v103
    %v733 = vpop.f32.mrb[0].mxu0
    %v734 = vadd.f32 0.0, %v733
    %v735 = vpop.f32.mrb[0].mxu0
    %736 = vmatprep.mubr.f32.mxu0 0.0
    %737 = vmatmul.mubr.f32.gmra.mrb[0].mxu0 %v104
    %v738 = vpop.f32.mrb[0].mxu0
    %v739 = vadd.f32 0.0, %v738
    %v740 = vpop.f32.mrb[0].mxu0
    %741 = vmatprep.mubr.f32.mxu0 0.0
    %742 = vmatmul.mubr.f32.gmra.mrb[0].mxu0 %v105
    %v743 = vpop.f32.mrb[0].mxu0
    %v744 = vadd.f32 0.0, %v743
    %v745 = vpop.f32.mrb[0].mxu0
    %746 = vdwg.mxu0
    %s747 = scalar_lea.vmem [#allocation2], 128
    %v748 = vld [vmem:[%s747] sm:$0xff]
    %v749 = vld [vmem:[%s747 + $0x8] sm:$0xff]
    %v750 = vld [vmem:[%s747 + $0x10] sm:$0xff]
    %v751 = vld [vmem:[%s747 + $0x18] sm:$0xff]
    %v752 = vld [vmem:[%s747 + $0x20] sm:$0xff]
    %v753 = vld [vmem:[%s747 + $0x28] sm:$0xff]
    %v754 = vld [vmem:[%s747 + $0x30] sm:$0xff]
    %v755 = vld [vmem:[%s747 + $0x38] sm:$0xff]
    %v757 = vsel %vm366, %v748, 0
    %v760 = vsel %vm366, %v749, 0
    %v763 = vsel %vm366, %v750, 0
    %v766 = vsel %vm366, %v751, 0
    %v769 = vsel %vm366, %v752, 0
    %v772 = vsel %vm366, %v753, 0
    %v775 = vsel %vm366, %v754, 0
    %v778 = vsel %vm366, %v755, 0
    %780 = vmatprep.subr.mxu0 0.0
    %781 = vmatpush1.msra.mxu0 %v709
    %782 = vmatprep.subr.mxu0 0.0
    %783 = vmatpush1.msra.mxu0 %v714
    %784 = vmatprep.subr.mxu0 0.0
    %785 = vmatpush1.msra.mxu0 %v719
    %786 = vmatprep.subr.mxu0 0.0
    %787 = vmatpush1.msra.mxu0 %v724
    %788 = vmatprep.subr.mxu0 0.0
    %789 = vmatpush1.msra.mxu0 %v729
    %790 = vmatprep.subr.mxu0 0.0
    %791 = vmatpush1.msra.mxu0 %v734
    %792 = vmatprep.subr.mxu0 0.0
    %793 = vmatpush1.msra.mxu0 %v739
    %794 = vmatprep.subr.mxu0 0.0
    %795 = vmatpush1.msra.mxu0 %v744
    %796 = vmatprep.subr.mxu0 0.0
    %797 = vmatpush1.msra.mxu0 0.0
    %798 = vmatprep.subr.mxu0 0.0
    %799 = vmatpush1.msra.mxu0 0.0
    %800 = vmatprep.subr.mxu0 0.0
    %801 = vmatpush1.msra.mxu0 0.0
    %802 = vmatprep.subr.mxu0 0.0
    %803 = vmatpush1.msra.mxu0 0.0
    %804 = vmatprep.subr.mxu0 0.0
    %805 = vmatpush1.msra.mxu0 0.0
    %806 = vmatprep.subr.mxu0 0.0
    %807 = vmatpush1.msra.mxu0 0.0
    %808 = vmatprep.subr.mxu0 0.0
    %809 = vmatpush1.msra.mxu0 0.0
    %810 = vmatprep.subr.mxu0 0.0
    %811 = vmatpush1.msra.mxu0 0.0
    %812 = vmatprep.subr.mxu0 0.0
    %813 = vmatpush1.msra.mxu0 0.0
    %814 = vmatprep.subr.mxu0 0.0
    %815 = vmatpush1.msra.mxu0 0.0
    %816 = vmatprep.subr.mxu0 0.0
    %817 = vmatpush1.msra.mxu0 0.0
    %818 = vmatprep.subr.mxu0 0.0
    %819 = vmatpush1.msra.mxu0 0.0
    %820 = vmatprep.subr.mxu0 0.0
    %821 = vmatpush1.msra.mxu0 0.0
    %822 = vmatprep.subr.mxu0 0.0
    %823 = vmatpush1.msra.mxu0 0.0
    %824 = vmatprep.subr.mxu0 0.0
    %825 = vmatpush1.msra.mxu0 0.0
    %826 = vmatprep.subr.mxu0 0.0
    %827 = vmatpush1.msra.mxu0 0.0
    %828 = vmatprep.subr.mxu0 0.0
    %829 = vmatpush1.msra.mxu0 0.0
    %830 = vmatprep.subr.mxu0 0.0
    %831 = vmatpush1.msra.mxu0 0.0
    %832 = vmatprep.subr.mxu0 0.0
    %833 = vmatpush1.msra.mxu0 0.0
    %834 = vmatprep.subr.mxu0 0.0
    %835 = vmatpush1.msra.mxu0 0.0
    %836 = vmatprep.subr.mxu0 0.0
    %837 = vmatpush1.msra.mxu0 0.0
    %838 = vmatprep.subr.mxu0 0.0
    %839 = vmatpush1.msra.mxu0 0.0
    %840 = vmatprep.subr.mxu0 0.0
    %841 = vmatpush1.msra.mxu0 0.0
    %842 = vmatprep.subr.mxu0 0.0
    %843 = vmatpush1.msra.mxu0 0.0
    %844 = vmatprep.mubr.f32.mxu0 0.0
    %845 = vmatmul.mubr.f32.gmra.mrb[0].mxu0 %v757
    %v846 = vpop.f32.mrb[0].mxu0
    %v847 = vadd.f32 0.0, %v846
    %v848 = vpop.f32.mrb[0].mxu0
    %849 = vmatprep.mubr.f32.mxu0 0.0
    %850 = vmatmul.mubr.f32.gmra.mrb[0].mxu0 %v760
    %v851 = vpop.f32.mrb[0].mxu0
    %v852 = vadd.f32 0.0, %v851
    %v853 = vpop.f32.mrb[0].mxu0
    %854 = vmatprep.mubr.f32.mxu0 0.0
    %855 = vmatmul.mubr.f32.gmra.mrb[0].mxu0 %v763
    %v856 = vpop.f32.mrb[0].mxu0
    %v857 = vadd.f32 0.0, %v856
    %v858 = vpop.f32.mrb[0].mxu0
    %859 = vmatprep.mubr.f32.mxu0 0.0
    %860 = vmatmul.mubr.f32.gmra.mrb[0].mxu0 %v766
    %v861 = vpop.f32.mrb[0].mxu0
    %v862 = vadd.f32 0.0, %v861
    %v863 = vpop.f32.mrb[0].mxu0
    %864 = vmatprep.mubr.f32.mxu0 0.0
    %865 = vmatmul.mubr.f32.gmra.mrb[0].mxu0 %v769
    %v866 = vpop.f32.mrb[0].mxu0
    %v867 = vadd.f32 0.0, %v866
    %v868 = vpop.f32.mrb[0].mxu0
    %869 = vmatprep.mubr.f32.mxu0 0.0
    %870 = vmatmul.mubr.f32.gmra.mrb[0].mxu0 %v772
    %v871 = vpop.f32.mrb[0].mxu0
    %v872 = vadd.f32 0.0, %v871
    %v873 = vpop.f32.mrb[0].mxu0
    %874 = vmatprep.mubr.f32.mxu0 0.0
    %875 = vmatmul.mubr.f32.gmra.mrb[0].mxu0 %v775
    %v876 = vpop.f32.mrb[0].mxu0
    %v877 = vadd.f32 0.0, %v876
    %v878 = vpop.f32.mrb[0].mxu0
    %879 = vmatprep.mubr.f32.mxu0 0.0
    %880 = vmatmul.mubr.f32.gmra.mrb[0].mxu0 %v778
    %v881 = vpop.f32.mrb[0].mxu0
    %v882 = vadd.f32 0.0, %v881
    %v883 = vpop.f32.mrb[0].mxu0
    %884 = vdwg.mxu0
    %v885 = vadd.f32 %v587, %v847
    %v886 = vadd.f32 %v592, %v852
    %v887 = vadd.f32 %v597, %v857
    %v888 = vadd.f32 %v602, %v862
    %v889 = vadd.f32 %v607, %v867
    %v890 = vadd.f32 %v612, %v872
    %v891 = vadd.f32 %v617, %v877
    %v892 = vadd.f32 %v622, %v882
    %v893 = vld [vmem:[%s5] sm:$0x1]
    %v895 = vlaneseq
    %v896 = vshrl.u32 %v895, 7
    %v897 = vsub.s32 0, %v896
    %v898 = vrot.slane %v893, %v897
    %v900 = vadd.f32 %v885, %v898
    %v901 = vadd.f32 %v886, %v898
    %v902 = vadd.f32 %v887, %v898
    %v903 = vadd.f32 %v888, %v898
    %v904 = vadd.f32 %v889, %v898
    %v905 = vadd.f32 %v890, %v898
    %v906 = vadd.f32 %v891, %v898
    %v907 = vadd.f32 %v892, %v898
    %v908 = vmax.f32 %v900, 0.0
    %v909 = vmax.f32 %v901, 0.0
    %v910 = vmax.f32 %v902, 0.0
    %v911 = vmax.f32 %v903, 0.0
    %v912 = vmax.f32 %v904, 0.0
    %v913 = vmax.f32 %v905, 0.0
    %v914 = vmax.f32 %v906, 0.0
    %v915 = vmax.f32 %v907, 0.0
    %v916 = vld [vmem:[#allocation8] sm:$0xff]
    %v917 = vld [vmem:[#allocation8 + $0x8] sm:$0xff]
    %v918 = vld [vmem:[#allocation8 + $0x10] sm:$0xff]
    %v919 = vld [vmem:[#allocation8 + $0x18] sm:$0xff]
    %v920 = vld [vmem:[#allocation8 + $0x20] sm:$0xff]
    %v921 = vld [vmem:[#allocation8 + $0x28] sm:$0xff]
    %v922 = vld [vmem:[#allocation8 + $0x30] sm:$0xff]
    %v923 = vld [vmem:[#allocation8 + $0x38] sm:$0xff]
    %v924 = vld [vmem:[#allocation8 + $0x40] sm:$0xff]
    %v925 = vld [vmem:[#allocation8 + $0x48] sm:$0xff]
    %v926 = vld [vmem:[#allocation8 + $0x50] sm:$0xff]
    %v927 = vld [vmem:[#allocation8 + $0x58] sm:$0xff]
    %v928 = vld [vmem:[#allocation8 + $0x60] sm:$0xff]
    %v929 = vld [vmem:[#allocation8 + $0x68] sm:$0xff]
    %v930 = vld [vmem:[#allocation8 + $0x70] sm:$0xff]
    %v931 = vld [vmem:[#allocation8 + $0x78] sm:$0xff]
    %932 = vmatprep.subr.mxu0 0.0
    %933 = vmatpush1.msra.mxu0 %v916
    %934 = vmatprep.subr.mxu0 0.0
    %935 = vmatpush1.msra.mxu0 %v917
    %936 = vmatprep.subr.mxu0 0.0
    %937 = vmatpush1.msra.mxu0 %v918
    %938 = vmatprep.subr.mxu0 0.0
    %939 = vmatpush1.msra.mxu0 %v919
    %940 = vmatprep.subr.mxu0 0.0
    %941 = vmatpush1.msra.mxu0 %v920
    %942 = vmatprep.subr.mxu0 0.0
    %943 = vmatpush1.msra.mxu0 %v921
    %944 = vmatprep.subr.mxu0 0.0
    %945 = vmatpush1.msra.mxu0 %v922
    %946 = vmatprep.subr.mxu0 0.0
    %947 = vmatpush1.msra.mxu0 %v923
    %948 = vmatprep.subr.mxu0 0.0
    %949 = vmatpush1.msra.mxu0 %v924
    %950 = vmatprep.subr.mxu0 0.0
    %951 = vmatpush1.msra.mxu0 %v925
    %952 = vmatprep.subr.mxu0 0.0
    %953 = vmatpush1.msra.mxu0 %v926
    %954 = vmatprep.subr.mxu0 0.0
    %955 = vmatpush1.msra.mxu0 %v927
    %956 = vmatprep.subr.mxu0 0.0
    %957 = vmatpush1.msra.mxu0 %v928
    %958 = vmatprep.subr.mxu0 0.0
    %959 = vmatpush1.msra.mxu0 %v929
    %960 = vmatprep.subr.mxu0 0.0
    %961 = vmatpush1.msra.mxu0 %v930
    %962 = vmatprep.subr.mxu0 0.0
    %963 = vmatpush1.msra.mxu0 %v931
    %964 = vmatprep.subr.mxu0 0.0
    %965 = vmatpush1.msra.mxu0 0.0
    %966 = vmatprep.subr.mxu0 0.0
    %967 = vmatpush1.msra.mxu0 0.0
    %968 = vmatprep.subr.mxu0 0.0
    %969 = vmatpush1.msra.mxu0 0.0
    %970 = vmatprep.subr.mxu0 0.0
    %971 = vmatpush1.msra.mxu0 0.0
    %972 = vmatprep.subr.mxu0 0.0
    %973 = vmatpush1.msra.mxu0 0.0
    %974 = vmatprep.subr.mxu0 0.0
    %975 = vmatpush1.msra.mxu0 0.0
    %976 = vmatprep.subr.mxu0 0.0
    %977 = vmatpush1.msra.mxu0 0.0
    %978 = vmatprep.subr.mxu0 0.0
    %979 = vmatpush1.msra.mxu0 0.0
    %980 = vmatprep.subr.mxu0 0.0
    %981 = vmatpush1.msra.mxu0 0.0
    %982 = vmatprep.subr.mxu0 0.0
    %983 = vmatpush1.msra.mxu0 0.0
    %984 = vmatprep.subr.mxu0 0.0
    %985 = vmatpush1.msra.mxu0 0.0
    %986 = vmatprep.subr.mxu0 0.0
    %987 = vmatpush1.msra.mxu0 0.0
    %988 = vmatprep.subr.mxu0 0.0
    %989 = vmatpush1.msra.mxu0 0.0
    %990 = vmatprep.subr.mxu0 0.0
    %991 = vmatpush1.msra.mxu0 0.0
    %992 = vmatprep.subr.mxu0 0.0
    %993 = vmatpush1.msra.mxu0 0.0
    %994 = vmatprep.subr.mxu0 0.0
    %995 = vmatpush1.msra.mxu0 0.0
    %996 = vmatprep.mubr.f32.mxu0 0.0
    %997 = vmatmul.mubr.f32.gmra.mrb[0].mxu0 %v908
    %v998 = vpop.f32.mrb[0].mxu0
    %v999 = vadd.f32 0.0, %v998
    %v1000 = vpop.f32.mrb[0].mxu0
    %1001 = vmatprep.mubr.f32.mxu0 0.0
    %1002 = vmatmul.mubr.f32.gmra.mrb[0].mxu0 %v909
    %v1003 = vpop.f32.mrb[0].mxu0
    %v1004 = vadd.f32 0.0, %v1003
    %v1005 = vpop.f32.mrb[0].mxu0
    %1006 = vmatprep.mubr.f32.mxu0 0.0
    %1007 = vmatmul.mubr.f32.gmra.mrb[0].mxu0 %v910
    %v1008 = vpop.f32.mrb[0].mxu0
    %v1009 = vadd.f32 0.0, %v1008
    %v1010 = vpop.f32.mrb[0].mxu0
    %1011 = vmatprep.mubr.f32.mxu0 0.0
    %1012 = vmatmul.mubr.f32.gmra.mrb[0].mxu0 %v911
    %v1013 = vpop.f32.mrb[0].mxu0
    %v1014 = vadd.f32 0.0, %v1013
    %v1015 = vpop.f32.mrb[0].mxu0
    %1016 = vmatprep.mubr.f32.mxu0 0.0
    %1017 = vmatmul.mubr.f32.gmra.mrb[0].mxu0 %v912
    %v1018 = vpop.f32.mrb[0].mxu0
    %v1019 = vadd.f32 0.0, %v1018
    %v1020 = vpop.f32.mrb[0].mxu0
    %1021 = vmatprep.mubr.f32.mxu0 0.0
    %1022 = vmatmul.mubr.f32.gmra.mrb[0].mxu0 %v913
    %v1023 = vpop.f32.mrb[0].mxu0
    %v1024 = vadd.f32 0.0, %v1023
    %v1025 = vpop.f32.mrb[0].mxu0
    %1026 = vmatprep.mubr.f32.mxu0 0.0
    %1027 = vmatmul.mubr.f32.gmra.mrb[0].mxu0 %v914
    %v1028 = vpop.f32.mrb[0].mxu0
    %v1029 = vadd.f32 0.0, %v1028
    %v1030 = vpop.f32.mrb[0].mxu0
    %1031 = vmatprep.mubr.f32.mxu0 0.0
    %1032 = vmatmul.mubr.f32.gmra.mrb[0].mxu0 %v915
    %v1033 = vpop.f32.mrb[0].mxu0
    %v1034 = vadd.f32 0.0, %v1033
    %v1035 = vpop.f32.mrb[0].mxu0
    %1036 = vdwg.mxu0
    %s1037 = scalar_lea.vmem [#allocation8], 128
    %v1038 = vld [vmem:[%s1037] sm:$0xff]
    %v1039 = vld [vmem:[%s1037 + $0x8] sm:$0xff]
    %v1040 = vld [vmem:[%s1037 + $0x10] sm:$0xff]
    %v1041 = vld [vmem:[%s1037 + $0x18] sm:$0xff]
    %v1042 = vld [vmem:[%s1037 + $0x20] sm:$0xff]
    %v1043 = vld [vmem:[%s1037 + $0x28] sm:$0xff]
    %v1044 = vld [vmem:[%s1037 + $0x30] sm:$0xff]
    %v1045 = vld [vmem:[%s1037 + $0x38] sm:$0xff]
    %v1046 = vld [vmem:[%s1037 + $0x40] sm:$0xff]
    %v1047 = vld [vmem:[%s1037 + $0x48] sm:$0xff]
    %v1048 = vld [vmem:[%s1037 + $0x50] sm:$0xff]
    %v1049 = vld [vmem:[%s1037 + $0x58] sm:$0xff]
    %v1050 = vld [vmem:[%s1037 + $0x60] sm:$0xff]
    %v1051 = vld [vmem:[%s1037 + $0x68] sm:$0xff]
    %v1052 = vld [vmem:[%s1037 + $0x70] sm:$0xff]
    %v1053 = vld [vmem:[%s1037 + $0x78] sm:$0xff]
    %1054 = vmatprep.subr.mxu0 0.0
    %1055 = vmatpush1.msra.mxu0 %v1038
    %1056 = vmatprep.subr.mxu0 0.0
    %1057 = vmatpush1.msra.mxu0 %v1039
    %1058 = vmatprep.subr.mxu0 0.0
    %1059 = vmatpush1.msra.mxu0 %v1040
    %1060 = vmatprep.subr.mxu0 0.0
    %1061 = vmatpush1.msra.mxu0 %v1041
    %1062 = vmatprep.subr.mxu0 0.0
    %1063 = vmatpush1.msra.mxu0 %v1042
    %1064 = vmatprep.subr.mxu0 0.0
    %1065 = vmatpush1.msra.mxu0 %v1043
    %1066 = vmatprep.subr.mxu0 0.0
    %1067 = vmatpush1.msra.mxu0 %v1044
    %1068 = vmatprep.subr.mxu0 0.0
    %1069 = vmatpush1.msra.mxu0 %v1045
    %1070 = vmatprep.subr.mxu0 0.0
    %1071 = vmatpush1.msra.mxu0 %v1046
    %1072 = vmatprep.subr.mxu0 0.0
    %1073 = vmatpush1.msra.mxu0 %v1047
    %1074 = vmatprep.subr.mxu0 0.0
    %1075 = vmatpush1.msra.mxu0 %v1048
    %1076 = vmatprep.subr.mxu0 0.0
    %1077 = vmatpush1.msra.mxu0 %v1049
    %1078 = vmatprep.subr.mxu0 0.0
    %1079 = vmatpush1.msra.mxu0 %v1050
    %1080 = vmatprep.subr.mxu0 0.0
    %1081 = vmatpush1.msra.mxu0 %v1051
    %1082 = vmatprep.subr.mxu0 0.0
    %1083 = vmatpush1.msra.mxu0 %v1052
    %1084 = vmatprep.subr.mxu0 0.0
    %1085 = vmatpush1.msra.mxu0 %v1053
    %1086 = vmatprep.subr.mxu0 0.0
    %1087 = vmatpush1.msra.mxu0 0.0
    %1088 = vmatprep.subr.mxu0 0.0
    %1089 = vmatpush1.msra.mxu0 0.0
    %1090 = vmatprep.subr.mxu0 0.0
    %1091 = vmatpush1.msra.mxu0 0.0
    %1092 = vmatprep.subr.mxu0 0.0
    %1093 = vmatpush1.msra.mxu0 0.0
    %1094 = vmatprep.subr.mxu0 0.0
    %1095 = vmatpush1.msra.mxu0 0.0
    %1096 = vmatprep.subr.mxu0 0.0
    %1097 = vmatpush1.msra.mxu0 0.0
    %1098 = vmatprep.subr.mxu0 0.0
    %1099 = vmatpush1.msra.mxu0 0.0
    %1100 = vmatprep.subr.mxu0 0.0
    %1101 = vmatpush1.msra.mxu0 0.0
    %1102 = vmatprep.subr.mxu0 0.0
    %1103 = vmatpush1.msra.mxu0 0.0
    %1104 = vmatprep.subr.mxu0 0.0
    %1105 = vmatpush1.msra.mxu0 0.0
    %1106 = vmatprep.subr.mxu0 0.0
    %1107 = vmatpush1.msra.mxu0 0.0
    %1108 = vmatprep.subr.mxu0 0.0
    %1109 = vmatpush1.msra.mxu0 0.0
    %1110 = vmatprep.subr.mxu0 0.0
    %1111 = vmatpush1.msra.mxu0 0.0
    %1112 = vmatprep.subr.mxu0 0.0
    %1113 = vmatpush1.msra.mxu0 0.0
    %1114 = vmatprep.subr.mxu0 0.0
    %1115 = vmatpush1.msra.mxu0 0.0
    %1116 = vmatprep.subr.mxu0 0.0
    %1117 = vmatpush1.msra.mxu0 0.0
    %1118 = vmatprep.mubr.f32.mxu0 0.0
    %1119 = vmatmul.mubr.f32.gmra.mrb[0].mxu0 %v908
    %v1120 = vpop.f32.mrb[0].mxu0
    %v1121 = vadd.f32 0.0, %v1120
    %v1122 = vpop.f32.mrb[0].mxu0
    %1123 = vmatprep.mubr.f32.mxu0 0.0
    %1124 = vmatmul.mubr.f32.gmra.mrb[0].mxu0 %v909
    %v1125 = vpop.f32.mrb[0].mxu0
    %v1126 = vadd.f32 0.0, %v1125
    %v1127 = vpop.f32.mrb[0].mxu0
    %1128 = vmatprep.mubr.f32.mxu0 0.0
    %1129 = vmatmul.mubr.f32.gmra.mrb[0].mxu0 %v910
    %v1130 = vpop.f32.mrb[0].mxu0
    %v1131 = vadd.f32 0.0, %v1130
    %v1132 = vpop.f32.mrb[0].mxu0
    %1133 = vmatprep.mubr.f32.mxu0 0.0
    %1134 = vmatmul.mubr.f32.gmra.mrb[0].mxu0 %v911
    %v1135 = vpop.f32.mrb[0].mxu0
    %v1136 = vadd.f32 0.0, %v1135
    %v1137 = vpop.f32.mrb[0].mxu0
    %1138 = vmatprep.mubr.f32.mxu0 0.0
    %1139 = vmatmul.mubr.f32.gmra.mrb[0].mxu0 %v912
    %v1140 = vpop.f32.mrb[0].mxu0
    %v1141 = vadd.f32 0.0, %v1140
    %v1142 = vpop.f32.mrb[0].mxu0
    %1143 = vmatprep.mubr.f32.mxu0 0.0
    %1144 = vmatmul.mubr.f32.gmra.mrb[0].mxu0 %v913
    %v1145 = vpop.f32.mrb[0].mxu0
    %v1146 = vadd.f32 0.0, %v1145
    %v1147 = vpop.f32.mrb[0].mxu0
    %1148 = vmatprep.mubr.f32.mxu0 0.0
    %1149 = vmatmul.mubr.f32.gmra.mrb[0].mxu0 %v914
    %v1150 = vpop.f32.mrb[0].mxu0
    %v1151 = vadd.f32 0.0, %v1150
    %v1152 = vpop.f32.mrb[0].mxu0
    %1153 = vmatprep.mubr.f32.mxu0 0.0
    %1154 = vmatmul.mubr.f32.gmra.mrb[0].mxu0 %v915
    %v1155 = vpop.f32.mrb[0].mxu0
    %v1156 = vadd.f32 0.0, %v1155
    %v1157 = vpop.f32.mrb[0].mxu0
    %1158 = vdwg.mxu0
    %1159 = vmatprep.subr.mxu0 0.0
    %1160 = vmatpush1.msra.mxu0 %v1121
    %1161 = vmatprep.subr.mxu0 0.0
    %1162 = vmatpush1.msra.mxu0 %v1126
    %1163 = vmatprep.subr.mxu0 0.0
    %1164 = vmatpush1.msra.mxu0 %v1131
    %1165 = vmatprep.subr.mxu0 0.0
    %1166 = vmatpush1.msra.mxu0 %v1136
    %1167 = vmatprep.subr.mxu0 0.0
    %1168 = vmatpush1.msra.mxu0 %v1141
    %1169 = vmatprep.subr.mxu0 0.0
    %1170 = vmatpush1.msra.mxu0 %v1146
    %1171 = vmatprep.subr.mxu0 0.0
    %1172 = vmatpush1.msra.mxu0 %v1151
    %1173 = vmatprep.subr.mxu0 0.0
    %1174 = vmatpush1.msra.mxu0 %v1156
    %1175 = vmatprep.subr.mxu0 0.0
    %1176 = vmatpush1.msra.mxu0 0.0
    %1177 = vmatprep.subr.mxu0 0.0
    %1178 = vmatpush1.msra.mxu0 0.0
    %1179 = vmatprep.subr.mxu0 0.0
    %1180 = vmatpush1.msra.mxu0 0.0
    %1181 = vmatprep.subr.mxu0 0.0
    %1182 = vmatpush1.msra.mxu0 0.0
    %1183 = vmatprep.subr.mxu0 0.0
    %1184 = vmatpush1.msra.mxu0 0.0
    %1185 = vmatprep.subr.mxu0 0.0
    %1186 = vmatpush1.msra.mxu0 0.0
    %1187 = vmatprep.subr.mxu0 0.0
    %1188 = vmatpush1.msra.mxu0 0.0
    %1189 = vmatprep.subr.mxu0 0.0
    %1190 = vmatpush1.msra.mxu0 0.0
    %1191 = vmatprep.subr.mxu0 0.0
    %1192 = vmatpush1.msra.mxu0 0.0
    %1193 = vmatprep.subr.mxu0 0.0
    %1194 = vmatpush1.msra.mxu0 0.0
    %1195 = vmatprep.subr.mxu0 0.0
    %1196 = vmatpush1.msra.mxu0 0.0
    %1197 = vmatprep.subr.mxu0 0.0
    %1198 = vmatpush1.msra.mxu0 0.0
    %1199 = vmatprep.subr.mxu0 0.0
    %1200 = vmatpush1.msra.mxu0 0.0
    %1201 = vmatprep.subr.mxu0 0.0
    %1202 = vmatpush1.msra.mxu0 0.0
    %1203 = vmatprep.subr.mxu0 0.0
    %1204 = vmatpush1.msra.mxu0 0.0
    %1205 = vmatprep.subr.mxu0 0.0
    %1206 = vmatpush1.msra.mxu0 0.0
    %1207 = vmatprep.subr.mxu0 0.0
    %1208 = vmatpush1.msra.mxu0 0.0
    %1209 = vmatprep.subr.mxu0 0.0
    %1210 = vmatpush1.msra.mxu0 0.0
    %1211 = vmatprep.subr.mxu0 0.0
    %1212 = vmatpush1.msra.mxu0 0.0
    %1213 = vmatprep.subr.mxu0 0.0
    %1214 = vmatpush1.msra.mxu0 0.0
    %1215 = vmatprep.subr.mxu0 0.0
    %1216 = vmatpush1.msra.mxu0 0.0
    %1217 = vmatprep.subr.mxu0 0.0
    %1218 = vmatpush1.msra.mxu0 0.0
    %1219 = vmatprep.subr.mxu0 0.0
    %1220 = vmatpush1.msra.mxu0 0.0
    %1221 = vmatprep.subr.mxu0 0.0
    %1222 = vmatpush1.msra.mxu0 0.0
    %1223 = vmatprep.mubr.f32.mxu0 0.0
    %1224 = vmatmul.mubr.f32.gmra.mrb[0].mxu0 %v368
    %v1225 = vpop.f32.mrb[0].mxu0
    %v1226 = vadd.f32 0.0, %v1225
    %v1227 = vpop.f32.mrb[0].mxu0
    %1228 = vmatprep.mubr.f32.mxu0 0.0
    %1229 = vmatmul.mubr.f32.gmra.mrb[0].mxu0 %v371
    %v1230 = vpop.f32.mrb[0].mxu0
    %v1231 = vadd.f32 0.0, %v1230
    %v1232 = vpop.f32.mrb[0].mxu0
    %1233 = vmatprep.mubr.f32.mxu0 0.0
    %1234 = vmatmul.mubr.f32.gmra.mrb[0].mxu0 %v374
    %v1235 = vpop.f32.mrb[0].mxu0
    %v1236 = vadd.f32 0.0, %v1235
    %v1237 = vpop.f32.mrb[0].mxu0
    %1238 = vmatprep.mubr.f32.mxu0 0.0
    %1239 = vmatmul.mubr.f32.gmra.mrb[0].mxu0 %v377
    %v1240 = vpop.f32.mrb[0].mxu0
    %v1241 = vadd.f32 0.0, %v1240
    %v1242 = vpop.f32.mrb[0].mxu0
    %1243 = vmatprep.mubr.f32.mxu0 0.0
    %1244 = vmatmul.mubr.f32.gmra.mrb[0].mxu0 %v380
    %v1245 = vpop.f32.mrb[0].mxu0
    %v1246 = vadd.f32 0.0, %v1245
    %v1247 = vpop.f32.mrb[0].mxu0
    %1248 = vmatprep.mubr.f32.mxu0 0.0
    %1249 = vmatmul.mubr.f32.gmra.mrb[0].mxu0 %v383
    %v1250 = vpop.f32.mrb[0].mxu0
    %v1251 = vadd.f32 0.0, %v1250
    %v1252 = vpop.f32.mrb[0].mxu0
    %1253 = vmatprep.mubr.f32.mxu0 0.0
    %1254 = vmatmul.mubr.f32.gmra.mrb[0].mxu0 %v386
    %v1255 = vpop.f32.mrb[0].mxu0
    %v1256 = vadd.f32 0.0, %v1255
    %v1257 = vpop.f32.mrb[0].mxu0
    %1258 = vmatprep.mubr.f32.mxu0 0.0
    %1259 = vmatmul.mubr.f32.gmra.mrb[0].mxu0 %v389
    %v1260 = vpop.f32.mrb[0].mxu0
    %v1261 = vadd.f32 0.0, %v1260
    %v1262 = vpop.f32.mrb[0].mxu0
    %1263 = vdwg.mxu0
    %1264 = vmatprep.subr.mxu0 0.0
    %1265 = vmatpush1.msra.mxu0 %v999
    %1266 = vmatprep.subr.mxu0 0.0
    %1267 = vmatpush1.msra.mxu0 %v1004
    %1268 = vmatprep.subr.mxu0 0.0
    %1269 = vmatpush1.msra.mxu0 %v1009
    %1270 = vmatprep.subr.mxu0 0.0
    %1271 = vmatpush1.msra.mxu0 %v1014
    %1272 = vmatprep.subr.mxu0 0.0
    %1273 = vmatpush1.msra.mxu0 %v1019
    %1274 = vmatprep.subr.mxu0 0.0
    %1275 = vmatpush1.msra.mxu0 %v1024
    %1276 = vmatprep.subr.mxu0 0.0
    %1277 = vmatpush1.msra.mxu0 %v1029
    %1278 = vmatprep.subr.mxu0 0.0
    %1279 = vmatpush1.msra.mxu0 %v1034
    %1280 = vmatprep.subr.mxu0 0.0
    %1281 = vmatpush1.msra.mxu0 0.0
    %1282 = vmatprep.subr.mxu0 0.0
    %1283 = vmatpush1.msra.mxu0 0.0
    %1284 = vmatprep.subr.mxu0 0.0
    %1285 = vmatpush1.msra.mxu0 0.0
    %1286 = vmatprep.subr.mxu0 0.0
    %1287 = vmatpush1.msra.mxu0 0.0
    %1288 = vmatprep.subr.mxu0 0.0
    %1289 = vmatpush1.msra.mxu0 0.0
    %1290 = vmatprep.subr.mxu0 0.0
    %1291 = vmatpush1.msra.mxu0 0.0
    %1292 = vmatprep.subr.mxu0 0.0
    %1293 = vmatpush1.msra.mxu0 0.0
    %1294 = vmatprep.subr.mxu0 0.0
    %1295 = vmatpush1.msra.mxu0 0.0
    %1296 = vmatprep.subr.mxu0 0.0
    %1297 = vmatpush1.msra.mxu0 0.0
    %1298 = vmatprep.subr.mxu0 0.0
    %1299 = vmatpush1.msra.mxu0 0.0
    %1300 = vmatprep.subr.mxu0 0.0
    %1301 = vmatpush1.msra.mxu0 0.0
    %1302 = vmatprep.subr.mxu0 0.0
    %1303 = vmatpush1.msra.mxu0 0.0
    %1304 = vmatprep.subr.mxu0 0.0
    %1305 = vmatpush1.msra.mxu0 0.0
    %1306 = vmatprep.subr.mxu0 0.0
    %1307 = vmatpush1.msra.mxu0 0.0
    %1308 = vmatprep.subr.mxu0 0.0
    %1309 = vmatpush1.msra.mxu0 0.0
    %1310 = vmatprep.subr.mxu0 0.0
    %1311 = vmatpush1.msra.mxu0 0.0
    %1312 = vmatprep.subr.mxu0 0.0
    %1313 = vmatpush1.msra.mxu0 0.0
    %1314 = vmatprep.subr.mxu0 0.0
    %1315 = vmatpush1.msra.mxu0 0.0
    %1316 = vmatprep.subr.mxu0 0.0
    %1317 = vmatpush1.msra.mxu0 0.0
    %1318 = vmatprep.subr.mxu0 0.0
    %1319 = vmatpush1.msra.mxu0 0.0
    %1320 = vmatprep.subr.mxu0 0.0
    %1321 = vmatpush1.msra.mxu0 0.0
    %1322 = vmatprep.subr.mxu0 0.0
    %1323 = vmatpush1.msra.mxu0 0.0
    %1324 = vmatprep.subr.mxu0 0.0
    %1325 = vmatpush1.msra.mxu0 0.0
    %1326 = vmatprep.subr.mxu0 0.0
    %1327 = vmatpush1.msra.mxu0 0.0
    %1328 = vmatprep.mubr.f32.mxu0 0.0
    %1329 = vmatmul.mubr.f32.gmra.mrb[0].mxu0 %v497
    %v1330 = vpop.f32.mrb[0].mxu0
    %v1331 = vadd.f32 %v1226, %v1330
    %v1332 = vpop.f32.mrb[0].mxu0
    %1333 = vmatprep.mubr.f32.mxu0 0.0
    %1334 = vmatmul.mubr.f32.gmra.mrb[0].mxu0 %v500
    %v1335 = vpop.f32.mrb[0].mxu0
    %v1336 = vadd.f32 %v1231, %v1335
    %v1337 = vpop.f32.mrb[0].mxu0
    %1338 = vmatprep.mubr.f32.mxu0 0.0
    %1339 = vmatmul.mubr.f32.gmra.mrb[0].mxu0 %v503
    %v1340 = vpop.f32.mrb[0].mxu0
    %v1341 = vadd.f32 %v1236, %v1340
    %v1342 = vpop.f32.mrb[0].mxu0
    %1343 = vmatprep.mubr.f32.mxu0 0.0
    %1344 = vmatmul.mubr.f32.gmra.mrb[0].mxu0 %v506
    %v1345 = vpop.f32.mrb[0].mxu0
    %v1346 = vadd.f32 %v1241, %v1345
    %v1347 = vpop.f32.mrb[0].mxu0
    %1348 = vmatprep.mubr.f32.mxu0 0.0
    %1349 = vmatmul.mubr.f32.gmra.mrb[0].mxu0 %v509
    %v1350 = vpop.f32.mrb[0].mxu0
    %v1351 = vadd.f32 %v1246, %v1350
    %v1352 = vpop.f32.mrb[0].mxu0
    %1353 = vmatprep.mubr.f32.mxu0 0.0
    %1354 = vmatmul.mubr.f32.gmra.mrb[0].mxu0 %v512
    %v1355 = vpop.f32.mrb[0].mxu0
    %v1356 = vadd.f32 %v1251, %v1355
    %v1357 = vpop.f32.mrb[0].mxu0
    %1358 = vmatprep.mubr.f32.mxu0 0.0
    %1359 = vmatmul.mubr.f32.gmra.mrb[0].mxu0 %v515
    %v1360 = vpop.f32.mrb[0].mxu0
    %v1361 = vadd.f32 %v1256, %v1360
    %v1362 = vpop.f32.mrb[0].mxu0
    %1363 = vmatprep.mubr.f32.mxu0 0.0
    %1364 = vmatmul.mubr.f32.gmra.mrb[0].mxu0 %v518
    %v1365 = vpop.f32.mrb[0].mxu0
    %v1366 = vadd.f32 %v1261, %v1365
    %v1367 = vpop.f32.mrb[0].mxu0
    %1368 = vdwg.mxu0
    %s1369 = scalar_lea.vmem [#allocation8], 256
    %v1370 = vld [vmem:[%s1369] sm:$0xff]
    %v1371 = vld [vmem:[%s1369 + $0x8] sm:$0xff]
    %v1372 = vld [vmem:[%s1369 + $0x10] sm:$0xff]
    %v1373 = vld [vmem:[%s1369 + $0x18] sm:$0xff]
    %v1374 = vld [vmem:[%s1369 + $0x20] sm:$0xff]
    %v1375 = vld [vmem:[%s1369 + $0x28] sm:$0xff]
    %v1376 = vld [vmem:[%s1369 + $0x30] sm:$0xff]
    %v1377 = vld [vmem:[%s1369 + $0x38] sm:$0xff]
    %v1378 = vld [vmem:[%s1369 + $0x40] sm:$0xff]
    %v1379 = vld [vmem:[%s1369 + $0x48] sm:$0xff]
    %v1380 = vld [vmem:[%s1369 + $0x50] sm:$0xff]
    %v1381 = vld [vmem:[%s1369 + $0x58] sm:$0xff]
    %v1382 = vld [vmem:[%s1369 + $0x60] sm:$0xff]
    %v1383 = vld [vmem:[%s1369 + $0x68] sm:$0xff]
    %v1384 = vld [vmem:[%s1369 + $0x70] sm:$0xff]
    %v1385 = vld [vmem:[%s1369 + $0x78] sm:$0xff]
    %1386 = vmatprep.subr.mxu0 0.0
    %1387 = vmatpush1.msra.mxu0 %v1370
    %1388 = vmatprep.subr.mxu0 0.0
    %1389 = vmatpush1.msra.mxu0 %v1371
    %1390 = vmatprep.subr.mxu0 0.0
    %1391 = vmatpush1.msra.mxu0 %v1372
    %1392 = vmatprep.subr.mxu0 0.0
    %1393 = vmatpush1.msra.mxu0 %v1373
    %1394 = vmatprep.subr.mxu0 0.0
    %1395 = vmatpush1.msra.mxu0 %v1374
    %1396 = vmatprep.subr.mxu0 0.0
    %1397 = vmatpush1.msra.mxu0 %v1375
    %1398 = vmatprep.subr.mxu0 0.0
    %1399 = vmatpush1.msra.mxu0 %v1376
    %1400 = vmatprep.subr.mxu0 0.0
    %1401 = vmatpush1.msra.mxu0 %v1377
    %1402 = vmatprep.subr.mxu0 0.0
    %1403 = vmatpush1.msra.mxu0 %v1378
    %1404 = vmatprep.subr.mxu0 0.0
    %1405 = vmatpush1.msra.mxu0 %v1379
    %1406 = vmatprep.subr.mxu0 0.0
    %1407 = vmatpush1.msra.mxu0 %v1380
    %1408 = vmatprep.subr.mxu0 0.0
    %1409 = vmatpush1.msra.mxu0 %v1381
    %1410 = vmatprep.subr.mxu0 0.0
    %1411 = vmatpush1.msra.mxu0 %v1382
    %1412 = vmatprep.subr.mxu0 0.0
    %1413 = vmatpush1.msra.mxu0 %v1383
    %1414 = vmatprep.subr.mxu0 0.0
    %1415 = vmatpush1.msra.mxu0 %v1384
    %1416 = vmatprep.subr.mxu0 0.0
    %1417 = vmatpush1.msra.mxu0 %v1385
    %1418 = vmatprep.subr.mxu0 0.0
    %1419 = vmatpush1.msra.mxu0 0.0
    %1420 = vmatprep.subr.mxu0 0.0
    %1421 = vmatpush1.msra.mxu0 0.0
    %1422 = vmatprep.subr.mxu0 0.0
    %1423 = vmatpush1.msra.mxu0 0.0
    %1424 = vmatprep.subr.mxu0 0.0
    %1425 = vmatpush1.msra.mxu0 0.0
    %1426 = vmatprep.subr.mxu0 0.0
    %1427 = vmatpush1.msra.mxu0 0.0
    %1428 = vmatprep.subr.mxu0 0.0
    %1429 = vmatpush1.msra.mxu0 0.0
    %1430 = vmatprep.subr.mxu0 0.0
    %1431 = vmatpush1.msra.mxu0 0.0
    %1432 = vmatprep.subr.mxu0 0.0
    %1433 = vmatpush1.msra.mxu0 0.0
    %1434 = vmatprep.subr.mxu0 0.0
    %1435 = vmatpush1.msra.mxu0 0.0
    %1436 = vmatprep.subr.mxu0 0.0
    %1437 = vmatpush1.msra.mxu0 0.0
    %1438 = vmatprep.subr.mxu0 0.0
    %1439 = vmatpush1.msra.mxu0 0.0
    %1440 = vmatprep.subr.mxu0 0.0
    %1441 = vmatpush1.msra.mxu0 0.0
    %1442 = vmatprep.subr.mxu0 0.0
    %1443 = vmatpush1.msra.mxu0 0.0
    %1444 = vmatprep.subr.mxu0 0.0
    %1445 = vmatpush1.msra.mxu0 0.0
    %1446 = vmatprep.subr.mxu0 0.0
    %1447 = vmatpush1.msra.mxu0 0.0
    %1448 = vmatprep.subr.mxu0 0.0
    %1449 = vmatpush1.msra.mxu0 0.0
    %1450 = vmatprep.mubr.f32.mxu0 0.0
    %1451 = vmatmul.mubr.f32.gmra.mrb[0].mxu0 %v908
    %v1452 = vpop.f32.mrb[0].mxu0
    %v1453 = vadd.f32 0.0, %v1452
    %v1454 = vpop.f32.mrb[0].mxu0
    %1455 = vmatprep.mubr.f32.mxu0 0.0
    %1456 = vmatmul.mubr.f32.gmra.mrb[0].mxu0 %v909
    %v1457 = vpop.f32.mrb[0].mxu0
    %v1458 = vadd.f32 0.0, %v1457
    %v1459 = vpop.f32.mrb[0].mxu0
    %1460 = vmatprep.mubr.f32.mxu0 0.0
    %1461 = vmatmul.mubr.f32.gmra.mrb[0].mxu0 %v910
    %v1462 = vpop.f32.mrb[0].mxu0
    %v1463 = vadd.f32 0.0, %v1462
    %v1464 = vpop.f32.mrb[0].mxu0
    %1465 = vmatprep.mubr.f32.mxu0 0.0
    %1466 = vmatmul.mubr.f32.gmra.mrb[0].mxu0 %v911
    %v1467 = vpop.f32.mrb[0].mxu0
    %v1468 = vadd.f32 0.0, %v1467
    %v1469 = vpop.f32.mrb[0].mxu0
    %1470 = vmatprep.mubr.f32.mxu0 0.0
    %1471 = vmatmul.mubr.f32.gmra.mrb[0].mxu0 %v912
    %v1472 = vpop.f32.mrb[0].mxu0
    %v1473 = vadd.f32 0.0, %v1472
    %v1474 = vpop.f32.mrb[0].mxu0
    %1475 = vmatprep.mubr.f32.mxu0 0.0
    %1476 = vmatmul.mubr.f32.gmra.mrb[0].mxu0 %v913
    %v1477 = vpop.f32.mrb[0].mxu0
    %v1478 = vadd.f32 0.0, %v1477
    %v1479 = vpop.f32.mrb[0].mxu0
    %1480 = vmatprep.mubr.f32.mxu0 0.0
    %1481 = vmatmul.mubr.f32.gmra.mrb[0].mxu0 %v914
    %v1482 = vpop.f32.mrb[0].mxu0
    %v1483 = vadd.f32 0.0, %v1482
    %v1484 = vpop.f32.mrb[0].mxu0
    %1485 = vmatprep.mubr.f32.mxu0 0.0
    %1486 = vmatmul.mubr.f32.gmra.mrb[0].mxu0 %v915
    %v1487 = vpop.f32.mrb[0].mxu0
    %v1488 = vadd.f32 0.0, %v1487
    %v1489 = vpop.f32.mrb[0].mxu0
    %1490 = vdwg.mxu0
    %1491 = vmatprep.subr.mxu0 0.0
    %1492 = vmatpush1.msra.mxu0 %v1453
    %1493 = vmatprep.subr.mxu0 0.0
    %1494 = vmatpush1.msra.mxu0 %v1458
    %1495 = vmatprep.subr.mxu0 0.0
    %1496 = vmatpush1.msra.mxu0 %v1463
    %1497 = vmatprep.subr.mxu0 0.0
    %1498 = vmatpush1.msra.mxu0 %v1468
    %1499 = vmatprep.subr.mxu0 0.0
    %1500 = vmatpush1.msra.mxu0 %v1473
    %1501 = vmatprep.subr.mxu0 0.0
    %1502 = vmatpush1.msra.mxu0 %v1478
    %1503 = vmatprep.subr.mxu0 0.0
    %1504 = vmatpush1.msra.mxu0 %v1483
    %1505 = vmatprep.subr.mxu0 0.0
    %1506 = vmatpush1.msra.mxu0 %v1488
    %1507 = vmatprep.subr.mxu0 0.0
    %1508 = vmatpush1.msra.mxu0 0.0
    %1509 = vmatprep.subr.mxu0 0.0
    %1510 = vmatpush1.msra.mxu0 0.0
    %1511 = vmatprep.subr.mxu0 0.0
    %1512 = vmatpush1.msra.mxu0 0.0
    %1513 = vmatprep.subr.mxu0 0.0
    %1514 = vmatpush1.msra.mxu0 0.0
    %1515 = vmatprep.subr.mxu0 0.0
    %1516 = vmatpush1.msra.mxu0 0.0
    %1517 = vmatprep.subr.mxu0 0.0
    %1518 = vmatpush1.msra.mxu0 0.0
    %1519 = vmatprep.subr.mxu0 0.0
    %1520 = vmatpush1.msra.mxu0 0.0
    %1521 = vmatprep.subr.mxu0 0.0
    %1522 = vmatpush1.msra.mxu0 0.0
    %1523 = vmatprep.subr.mxu0 0.0
    %1524 = vmatpush1.msra.mxu0 0.0
    %1525 = vmatprep.subr.mxu0 0.0
    %1526 = vmatpush1.msra.mxu0 0.0
    %1527 = vmatprep.subr.mxu0 0.0
    %1528 = vmatpush1.msra.mxu0 0.0
    %1529 = vmatprep.subr.mxu0 0.0
    %1530 = vmatpush1.msra.mxu0 0.0
    %1531 = vmatprep.subr.mxu0 0.0
    %1532 = vmatpush1.msra.mxu0 0.0
    %1533 = vmatprep.subr.mxu0 0.0
    %1534 = vmatpush1.msra.mxu0 0.0
    %1535 = vmatprep.subr.mxu0 0.0
    %1536 = vmatpush1.msra.mxu0 0.0
    %1537 = vmatprep.subr.mxu0 0.0
    %1538 = vmatpush1.msra.mxu0 0.0
    %1539 = vmatprep.subr.mxu0 0.0
    %1540 = vmatpush1.msra.mxu0 0.0
    %1541 = vmatprep.subr.mxu0 0.0
    %1542 = vmatpush1.msra.mxu0 0.0
    %1543 = vmatprep.subr.mxu0 0.0
    %1544 = vmatpush1.msra.mxu0 0.0
    %1545 = vmatprep.subr.mxu0 0.0
    %1546 = vmatpush1.msra.mxu0 0.0
    %1547 = vmatprep.subr.mxu0 0.0
    %1548 = vmatpush1.msra.mxu0 0.0
    %1549 = vmatprep.subr.mxu0 0.0
    %1550 = vmatpush1.msra.mxu0 0.0
    %1551 = vmatprep.subr.mxu0 0.0
    %1552 = vmatpush1.msra.mxu0 0.0
    %1553 = vmatprep.subr.mxu0 0.0
    %1554 = vmatpush1.msra.mxu0 0.0
    %1555 = vmatprep.mubr.f32.mxu0 0.0
    %1556 = vmatmul.mubr.f32.gmra.mrb[0].mxu0 %v757
    %v1557 = vpop.f32.mrb[0].mxu0
    %v1558 = vadd.f32 0.0, %v1557
    %v1559 = vpop.f32.mrb[0].mxu0
    %1560 = vmatprep.mubr.f32.mxu0 0.0
    %1561 = vmatmul.mubr.f32.gmra.mrb[0].mxu0 %v760
    %v1562 = vpop.f32.mrb[0].mxu0
    %v1563 = vadd.f32 0.0, %v1562
    %v1564 = vpop.f32.mrb[0].mxu0
    %1565 = vmatprep.mubr.f32.mxu0 0.0
    %1566 = vmatmul.mubr.f32.gmra.mrb[0].mxu0 %v763
    %v1567 = vpop.f32.mrb[0].mxu0
    %v1568 = vadd.f32 0.0, %v1567
    %v1569 = vpop.f32.mrb[0].mxu0
    %1570 = vmatprep.mubr.f32.mxu0 0.0
    %1571 = vmatmul.mubr.f32.gmra.mrb[0].mxu0 %v766
    %v1572 = vpop.f32.mrb[0].mxu0
    %v1573 = vadd.f32 0.0, %v1572
    %v1574 = vpop.f32.mrb[0].mxu0
    %1575 = vmatprep.mubr.f32.mxu0 0.0
    %1576 = vmatmul.mubr.f32.gmra.mrb[0].mxu0 %v769
    %v1577 = vpop.f32.mrb[0].mxu0
    %v1578 = vadd.f32 0.0, %v1577
    %v1579 = vpop.f32.mrb[0].mxu0
    %1580 = vmatprep.mubr.f32.mxu0 0.0
    %1581 = vmatmul.mubr.f32.gmra.mrb[0].mxu0 %v772
    %v1582 = vpop.f32.mrb[0].mxu0
    %v1583 = vadd.f32 0.0, %v1582
    %v1584 = vpop.f32.mrb[0].mxu0
    %1585 = vmatprep.mubr.f32.mxu0 0.0
    %1586 = vmatmul.mubr.f32.gmra.mrb[0].mxu0 %v775
    %v1587 = vpop.f32.mrb[0].mxu0
    %v1588 = vadd.f32 0.0, %v1587
    %v1589 = vpop.f32.mrb[0].mxu0
    %1590 = vmatprep.mubr.f32.mxu0 0.0
    %1591 = vmatmul.mubr.f32.gmra.mrb[0].mxu0 %v778
    %v1592 = vpop.f32.mrb[0].mxu0
    %v1593 = vadd.f32 0.0, %v1592
    %v1594 = vpop.f32.mrb[0].mxu0
    %1595 = vdwg.mxu0
    %v1596 = vadd.f32 %v1331, %v1558
    %v1597 = vadd.f32 %v1336, %v1563
    %v1598 = vadd.f32 %v1341, %v1568
    %v1599 = vadd.f32 %v1346, %v1573
    %v1600 = vadd.f32 %v1351, %v1578
    %v1601 = vadd.f32 %v1356, %v1583
    %v1602 = vadd.f32 %v1361, %v1588
    %v1603 = vadd.f32 %v1366, %v1593
    %v1604 = vld [vmem:[%s6] sm:$0x1]
    %v1606 = vlaneseq
    %v1607 = vshrl.u32 %v1606, 7
    %v1608 = vsub.s32 0, %v1607
    %v1609 = vrot.slane %v1604, %v1608
    %v1611 = vadd.f32 %v1596, %v1609
    %v1612 = vadd.f32 %v1597, %v1609
    %v1613 = vadd.f32 %v1598, %v1609
    %v1614 = vadd.f32 %v1599, %v1609
    %v1615 = vadd.f32 %v1600, %v1609
    %v1616 = vadd.f32 %v1601, %v1609
    %v1617 = vadd.f32 %v1602, %v1609
    %v1618 = vadd.f32 %v1603, %v1609
    %v1619 = vmax.f32 %v1611, 0.0
    %v1620 = vmax.f32 %v1612, 0.0
    %v1621 = vmax.f32 %v1613, 0.0
    %v1622 = vmax.f32 %v1614, 0.0
    %v1623 = vmax.f32 %v1615, 0.0
    %v1624 = vmax.f32 %v1616, 0.0
    %v1625 = vmax.f32 %v1617, 0.0
    %v1626 = vmax.f32 %v1618, 0.0
    %v1627 = vld [vmem:[#allocation10] sm:$0xff]
    %v1628 = vld [vmem:[#allocation10 + $0x8] sm:$0xff]
    %v1629 = vld [vmem:[#allocation10 + $0x10] sm:$0xff]
    %v1630 = vld [vmem:[#allocation10 + $0x18] sm:$0xff]
    %v1631 = vld [vmem:[#allocation10 + $0x20] sm:$0xff]
    %v1632 = vld [vmem:[#allocation10 + $0x28] sm:$0xff]
    %v1633 = vld [vmem:[#allocation10 + $0x30] sm:$0xff]
    %v1634 = vld [vmem:[#allocation10 + $0x38] sm:$0xff]
    %v1635 = vld [vmem:[#allocation10 + $0x40] sm:$0xff]
    %v1636 = vld [vmem:[#allocation10 + $0x48] sm:$0xff]
    %v1637 = vld [vmem:[#allocation10 + $0x50] sm:$0xff]
    %v1638 = vld [vmem:[#allocation10 + $0x58] sm:$0xff]
    %v1639 = vld [vmem:[#allocation10 + $0x60] sm:$0xff]
    %v1640 = vld [vmem:[#allocation10 + $0x68] sm:$0xff]
    %v1641 = vld [vmem:[#allocation10 + $0x70] sm:$0xff]
    %v1642 = vld [vmem:[#allocation10 + $0x78] sm:$0xff]
    %1643 = vmatprep.subr.mxu0 0.0
    %1644 = vmatpush1.msra.mxu0 %v1627
    %1645 = vmatprep.subr.mxu0 0.0
    %1646 = vmatpush1.msra.mxu0 %v1628
    %1647 = vmatprep.subr.mxu0 0.0
    %1648 = vmatpush1.msra.mxu0 %v1629
    %1649 = vmatprep.subr.mxu0 0.0
    %1650 = vmatpush1.msra.mxu0 %v1630
    %1651 = vmatprep.subr.mxu0 0.0
    %1652 = vmatpush1.msra.mxu0 %v1631
    %1653 = vmatprep.subr.mxu0 0.0
    %1654 = vmatpush1.msra.mxu0 %v1632
    %1655 = vmatprep.subr.mxu0 0.0
    %1656 = vmatpush1.msra.mxu0 %v1633
    %1657 = vmatprep.subr.mxu0 0.0
    %1658 = vmatpush1.msra.mxu0 %v1634
    %1659 = vmatprep.subr.mxu0 0.0
    %1660 = vmatpush1.msra.mxu0 %v1635
    %1661 = vmatprep.subr.mxu0 0.0
    %1662 = vmatpush1.msra.mxu0 %v1636
    %1663 = vmatprep.subr.mxu0 0.0
    %1664 = vmatpush1.msra.mxu0 %v1637
    %1665 = vmatprep.subr.mxu0 0.0
    %1666 = vmatpush1.msra.mxu0 %v1638
    %1667 = vmatprep.subr.mxu0 0.0
    %1668 = vmatpush1.msra.mxu0 %v1639
    %1669 = vmatprep.subr.mxu0 0.0
    %1670 = vmatpush1.msra.mxu0 %v1640
    %1671 = vmatprep.subr.mxu0 0.0
    %1672 = vmatpush1.msra.mxu0 %v1641
    %1673 = vmatprep.subr.mxu0 0.0
    %1674 = vmatpush1.msra.mxu0 %v1642
    %1675 = vmatprep.subr.mxu0 0.0
    %1676 = vmatpush1.msra.mxu0 0.0
    %1677 = vmatprep.subr.mxu0 0.0
    %1678 = vmatpush1.msra.mxu0 0.0
    %1679 = vmatprep.subr.mxu0 0.0
    %1680 = vmatpush1.msra.mxu0 0.0
    %1681 = vmatprep.subr.mxu0 0.0
    %1682 = vmatpush1.msra.mxu0 0.0
    %1683 = vmatprep.subr.mxu0 0.0
    %1684 = vmatpush1.msra.mxu0 0.0
    %1685 = vmatprep.subr.mxu0 0.0
    %1686 = vmatpush1.msra.mxu0 0.0
    %1687 = vmatprep.subr.mxu0 0.0
    %1688 = vmatpush1.msra.mxu0 0.0
    %1689 = vmatprep.subr.mxu0 0.0
    %1690 = vmatpush1.msra.mxu0 0.0
    %1691 = vmatprep.subr.mxu0 0.0
    %1692 = vmatpush1.msra.mxu0 0.0
    %1693 = vmatprep.subr.mxu0 0.0
    %1694 = vmatpush1.msra.mxu0 0.0
    %1695 = vmatprep.subr.mxu0 0.0
    %1696 = vmatpush1.msra.mxu0 0.0
    %1697 = vmatprep.subr.mxu0 0.0
    %1698 = vmatpush1.msra.mxu0 0.0
    %1699 = vmatprep.subr.mxu0 0.0
    %1700 = vmatpush1.msra.mxu0 0.0
    %1701 = vmatprep.subr.mxu0 0.0
    %1702 = vmatpush1.msra.mxu0 0.0
    %1703 = vmatprep.subr.mxu0 0.0
    %1704 = vmatpush1.msra.mxu0 0.0
    %1705 = vmatprep.subr.mxu0 0.0
    %1706 = vmatpush1.msra.mxu0 0.0
    %1707 = vmatprep.mubr.f32.mxu0 0.0
    %1708 = vmatmul.mubr.f32.gmra.mrb[0].mxu0 %v1619
    %v1709 = vpop.f32.mrb[0].mxu0
    %v1710 = vadd.f32 0.0, %v1709
    %v1711 = vpop.f32.mrb[0].mxu0
    %1712 = vmatprep.mubr.f32.mxu0 0.0
    %1713 = vmatmul.mubr.f32.gmra.mrb[0].mxu0 %v1620
    %v1714 = vpop.f32.mrb[0].mxu0
    %v1715 = vadd.f32 0.0, %v1714
    %v1716 = vpop.f32.mrb[0].mxu0
    %1717 = vmatprep.mubr.f32.mxu0 0.0
    %1718 = vmatmul.mubr.f32.gmra.mrb[0].mxu0 %v1621
    %v1719 = vpop.f32.mrb[0].mxu0
    %v1720 = vadd.f32 0.0, %v1719
    %v1721 = vpop.f32.mrb[0].mxu0
    %1722 = vmatprep.mubr.f32.mxu0 0.0
    %1723 = vmatmul.mubr.f32.gmra.mrb[0].mxu0 %v1622
    %v1724 = vpop.f32.mrb[0].mxu0
    %v1725 = vadd.f32 0.0, %v1724
    %v1726 = vpop.f32.mrb[0].mxu0
    %1727 = vmatprep.mubr.f32.mxu0 0.0
    %1728 = vmatmul.mubr.f32.gmra.mrb[0].mxu0 %v1623
    %v1729 = vpop.f32.mrb[0].mxu0
    %v1730 = vadd.f32 0.0, %v1729
    %v1731 = vpop.f32.mrb[0].mxu0
    %1732 = vmatprep.mubr.f32.mxu0 0.0
    %1733 = vmatmul.mubr.f32.gmra.mrb[0].mxu0 %v1624
    %v1734 = vpop.f32.mrb[0].mxu0
    %v1735 = vadd.f32 0.0, %v1734
    %v1736 = vpop.f32.mrb[0].mxu0
    %1737 = vmatprep.mubr.f32.mxu0 0.0
    %1738 = vmatmul.mubr.f32.gmra.mrb[0].mxu0 %v1625
    %v1739 = vpop.f32.mrb[0].mxu0
    %v1740 = vadd.f32 0.0, %v1739
    %v1741 = vpop.f32.mrb[0].mxu0
    %1742 = vmatprep.mubr.f32.mxu0 0.0
    %1743 = vmatmul.mubr.f32.gmra.mrb[0].mxu0 %v1626
    %v1744 = vpop.f32.mrb[0].mxu0
    %v1745 = vadd.f32 0.0, %v1744
    %v1746 = vpop.f32.mrb[0].mxu0
    %1747 = vdwg.mxu0
    %s1748 = scalar_lea.vmem [#allocation10], 128
    %v1749 = vld [vmem:[%s1748] sm:$0xff]
    %v1750 = vld [vmem:[%s1748 + $0x8] sm:$0xff]
    %v1751 = vld [vmem:[%s1748 + $0x10] sm:$0xff]
    %v1752 = vld [vmem:[%s1748 + $0x18] sm:$0xff]
    %v1753 = vld [vmem:[%s1748 + $0x20] sm:$0xff]
    %v1754 = vld [vmem:[%s1748 + $0x28] sm:$0xff]
    %v1755 = vld [vmem:[%s1748 + $0x30] sm:$0xff]
    %v1756 = vld [vmem:[%s1748 + $0x38] sm:$0xff]
    %v1757 = vld [vmem:[%s1748 + $0x40] sm:$0xff]
    %v1758 = vld [vmem:[%s1748 + $0x48] sm:$0xff]
    %v1759 = vld [vmem:[%s1748 + $0x50] sm:$0xff]
    %v1760 = vld [vmem:[%s1748 + $0x58] sm:$0xff]
    %v1761 = vld [vmem:[%s1748 + $0x60] sm:$0xff]
    %v1762 = vld [vmem:[%s1748 + $0x68] sm:$0xff]
    %v1763 = vld [vmem:[%s1748 + $0x70] sm:$0xff]
    %v1764 = vld [vmem:[%s1748 + $0x78] sm:$0xff]
    %1765 = vmatprep.subr.mxu0 0.0
    %1766 = vmatpush1.msra.mxu0 %v1749
    %1767 = vmatprep.subr.mxu0 0.0
    %1768 = vmatpush1.msra.mxu0 %v1750
    %1769 = vmatprep.subr.mxu0 0.0
    %1770 = vmatpush1.msra.mxu0 %v1751
    %1771 = vmatprep.subr.mxu0 0.0
    %1772 = vmatpush1.msra.mxu0 %v1752
    %1773 = vmatprep.subr.mxu0 0.0
    %1774 = vmatpush1.msra.mxu0 %v1753
    %1775 = vmatprep.subr.mxu0 0.0
    %1776 = vmatpush1.msra.mxu0 %v1754
    %1777 = vmatprep.subr.mxu0 0.0
    %1778 = vmatpush1.msra.mxu0 %v1755
    %1779 = vmatprep.subr.mxu0 0.0
    %1780 = vmatpush1.msra.mxu0 %v1756
    %1781 = vmatprep.subr.mxu0 0.0
    %1782 = vmatpush1.msra.mxu0 %v1757
    %1783 = vmatprep.subr.mxu0 0.0
    %1784 = vmatpush1.msra.mxu0 %v1758
    %1785 = vmatprep.subr.mxu0 0.0
    %1786 = vmatpush1.msra.mxu0 %v1759
    %1787 = vmatprep.subr.mxu0 0.0
    %1788 = vmatpush1.msra.mxu0 %v1760
    %1789 = vmatprep.subr.mxu0 0.0
    %1790 = vmatpush1.msra.mxu0 %v1761
    %1791 = vmatprep.subr.mxu0 0.0
    %1792 = vmatpush1.msra.mxu0 %v1762
    %1793 = vmatprep.subr.mxu0 0.0
    %1794 = vmatpush1.msra.mxu0 %v1763
    %1795 = vmatprep.subr.mxu0 0.0
    %1796 = vmatpush1.msra.mxu0 %v1764
    %1797 = vmatprep.subr.mxu0 0.0
    %1798 = vmatpush1.msra.mxu0 0.0
    %1799 = vmatprep.subr.mxu0 0.0
    %1800 = vmatpush1.msra.mxu0 0.0
    %1801 = vmatprep.subr.mxu0 0.0
    %1802 = vmatpush1.msra.mxu0 0.0
    %1803 = vmatprep.subr.mxu0 0.0
    %1804 = vmatpush1.msra.mxu0 0.0
    %1805 = vmatprep.subr.mxu0 0.0
    %1806 = vmatpush1.msra.mxu0 0.0
    %1807 = vmatprep.subr.mxu0 0.0
    %1808 = vmatpush1.msra.mxu0 0.0
    %1809 = vmatprep.subr.mxu0 0.0
    %1810 = vmatpush1.msra.mxu0 0.0
    %1811 = vmatprep.subr.mxu0 0.0
    %1812 = vmatpush1.msra.mxu0 0.0
    %1813 = vmatprep.subr.mxu0 0.0
    %1814 = vmatpush1.msra.mxu0 0.0
    %1815 = vmatprep.subr.mxu0 0.0
    %1816 = vmatpush1.msra.mxu0 0.0
    %1817 = vmatprep.subr.mxu0 0.0
    %1818 = vmatpush1.msra.mxu0 0.0
    %1819 = vmatprep.subr.mxu0 0.0
    %1820 = vmatpush1.msra.mxu0 0.0
    %1821 = vmatprep.subr.mxu0 0.0
    %1822 = vmatpush1.msra.mxu0 0.0
    %1823 = vmatprep.subr.mxu0 0.0
    %1824 = vmatpush1.msra.mxu0 0.0
    %1825 = vmatprep.subr.mxu0 0.0
    %1826 = vmatpush1.msra.mxu0 0.0
    %1827 = vmatprep.subr.mxu0 0.0
    %1828 = vmatpush1.msra.mxu0 0.0
    %1829 = vmatprep.mubr.f32.mxu0 0.0
    %1830 = vmatmul.mubr.f32.gmra.mrb[0].mxu0 %v1619
    %v1831 = vpop.f32.mrb[0].mxu0
    %v1832 = vadd.f32 0.0, %v1831
    %v1833 = vpop.f32.mrb[0].mxu0
    %1834 = vmatprep.mubr.f32.mxu0 0.0
    %1835 = vmatmul.mubr.f32.gmra.mrb[0].mxu0 %v1620
    %v1836 = vpop.f32.mrb[0].mxu0
    %v1837 = vadd.f32 0.0, %v1836
    %v1838 = vpop.f32.mrb[0].mxu0
    %1839 = vmatprep.mubr.f32.mxu0 0.0
    %1840 = vmatmul.mubr.f32.gmra.mrb[0].mxu0 %v1621
    %v1841 = vpop.f32.mrb[0].mxu0
    %v1842 = vadd.f32 0.0, %v1841
    %v1843 = vpop.f32.mrb[0].mxu0
    %1844 = vmatprep.mubr.f32.mxu0 0.0
    %1845 = vmatmul.mubr.f32.gmra.mrb[0].mxu0 %v1622
    %v1846 = vpop.f32.mrb[0].mxu0
    %v1847 = vadd.f32 0.0, %v1846
    %v1848 = vpop.f32.mrb[0].mxu0
    %1849 = vmatprep.mubr.f32.mxu0 0.0
    %1850 = vmatmul.mubr.f32.gmra.mrb[0].mxu0 %v1623
    %v1851 = vpop.f32.mrb[0].mxu0
    %v1852 = vadd.f32 0.0, %v1851
    %v1853 = vpop.f32.mrb[0].mxu0
    %1854 = vmatprep.mubr.f32.mxu0 0.0
    %1855 = vmatmul.mubr.f32.gmra.mrb[0].mxu0 %v1624
    %v1856 = vpop.f32.mrb[0].mxu0
    %v1857 = vadd.f32 0.0, %v1856
    %v1858 = vpop.f32.mrb[0].mxu0
    %1859 = vmatprep.mubr.f32.mxu0 0.0
    %1860 = vmatmul.mubr.f32.gmra.mrb[0].mxu0 %v1625
    %v1861 = vpop.f32.mrb[0].mxu0
    %v1862 = vadd.f32 0.0, %v1861
    %v1863 = vpop.f32.mrb[0].mxu0
    %1864 = vmatprep.mubr.f32.mxu0 0.0
    %1865 = vmatmul.mubr.f32.gmra.mrb[0].mxu0 %v1626
    %v1866 = vpop.f32.mrb[0].mxu0
    %v1867 = vadd.f32 0.0, %v1866
    %v1868 = vpop.f32.mrb[0].mxu0
    %1869 = vdwg.mxu0
    %1870 = vmatprep.subr.mxu0 0.0
    %1871 = vmatpush1.msra.mxu0 %v1832
    %1872 = vmatprep.subr.mxu0 0.0
    %1873 = vmatpush1.msra.mxu0 %v1837
    %1874 = vmatprep.subr.mxu0 0.0
    %1875 = vmatpush1.msra.mxu0 %v1842
    %1876 = vmatprep.subr.mxu0 0.0
    %1877 = vmatpush1.msra.mxu0 %v1847
    %1878 = vmatprep.subr.mxu0 0.0
    %1879 = vmatpush1.msra.mxu0 %v1852
    %1880 = vmatprep.subr.mxu0 0.0
    %1881 = vmatpush1.msra.mxu0 %v1857
    %1882 = vmatprep.subr.mxu0 0.0
    %1883 = vmatpush1.msra.mxu0 %v1862
    %1884 = vmatprep.subr.mxu0 0.0
    %1885 = vmatpush1.msra.mxu0 %v1867
    %1886 = vmatprep.subr.mxu0 0.0
    %1887 = vmatpush1.msra.mxu0 0.0
    %1888 = vmatprep.subr.mxu0 0.0
    %1889 = vmatpush1.msra.mxu0 0.0
    %1890 = vmatprep.subr.mxu0 0.0
    %1891 = vmatpush1.msra.mxu0 0.0
    %1892 = vmatprep.subr.mxu0 0.0
    %1893 = vmatpush1.msra.mxu0 0.0
    %1894 = vmatprep.subr.mxu0 0.0
    %1895 = vmatpush1.msra.mxu0 0.0
    %1896 = vmatprep.subr.mxu0 0.0
    %1897 = vmatpush1.msra.mxu0 0.0
    %1898 = vmatprep.subr.mxu0 0.0
    %1899 = vmatpush1.msra.mxu0 0.0
    %1900 = vmatprep.subr.mxu0 0.0
    %1901 = vmatpush1.msra.mxu0 0.0
    %1902 = vmatprep.subr.mxu0 0.0
    %1903 = vmatpush1.msra.mxu0 0.0
    %1904 = vmatprep.subr.mxu0 0.0
    %1905 = vmatpush1.msra.mxu0 0.0
    %1906 = vmatprep.subr.mxu0 0.0
    %1907 = vmatpush1.msra.mxu0 0.0
    %1908 = vmatprep.subr.mxu0 0.0
    %1909 = vmatpush1.msra.mxu0 0.0
    %1910 = vmatprep.subr.mxu0 0.0
    %1911 = vmatpush1.msra.mxu0 0.0
    %1912 = vmatprep.subr.mxu0 0.0
    %1913 = vmatpush1.msra.mxu0 0.0
    %1914 = vmatprep.subr.mxu0 0.0
    %1915 = vmatpush1.msra.mxu0 0.0
    %1916 = vmatprep.subr.mxu0 0.0
    %1917 = vmatpush1.msra.mxu0 0.0
    %1918 = vmatprep.subr.mxu0 0.0
    %1919 = vmatpush1.msra.mxu0 0.0
    %1920 = vmatprep.subr.mxu0 0.0
    %1921 = vmatpush1.msra.mxu0 0.0
    %1922 = vmatprep.subr.mxu0 0.0
    %1923 = vmatpush1.msra.mxu0 0.0
    %1924 = vmatprep.subr.mxu0 0.0
    %1925 = vmatpush1.msra.mxu0 0.0
    %1926 = vmatprep.subr.mxu0 0.0
    %1927 = vmatpush1.msra.mxu0 0.0
    %1928 = vmatprep.subr.mxu0 0.0
    %1929 = vmatpush1.msra.mxu0 0.0
    %1930 = vmatprep.subr.mxu0 0.0
    %1931 = vmatpush1.msra.mxu0 0.0
    %1932 = vmatprep.subr.mxu0 0.0
    %1933 = vmatpush1.msra.mxu0 0.0
    %1934 = vmatprep.mubr.f32.mxu0 0.0
    %1935 = vmatmul.mubr.f32.gmra.mrb[0].mxu0 %v368
    %v1936 = vpop.f32.mrb[0].mxu0
    %v1937 = vadd.f32 0.0, %v1936
    %v1938 = vpop.f32.mrb[0].mxu0
    %1939 = vmatprep.mubr.f32.mxu0 0.0
    %1940 = vmatmul.mubr.f32.gmra.mrb[0].mxu0 %v371
    %v1941 = vpop.f32.mrb[0].mxu0
    %v1942 = vadd.f32 0.0, %v1941
    %v1943 = vpop.f32.mrb[0].mxu0
    %1944 = vmatprep.mubr.f32.mxu0 0.0
    %1945 = vmatmul.mubr.f32.gmra.mrb[0].mxu0 %v374
    %v1946 = vpop.f32.mrb[0].mxu0
    %v1947 = vadd.f32 0.0, %v1946
    %v1948 = vpop.f32.mrb[0].mxu0
    %1949 = vmatprep.mubr.f32.mxu0 0.0
    %1950 = vmatmul.mubr.f32.gmra.mrb[0].mxu0 %v377
    %v1951 = vpop.f32.mrb[0].mxu0
    %v1952 = vadd.f32 0.0, %v1951
    %v1953 = vpop.f32.mrb[0].mxu0
    %1954 = vmatprep.mubr.f32.mxu0 0.0
    %1955 = vmatmul.mubr.f32.gmra.mrb[0].mxu0 %v380
    %v1956 = vpop.f32.mrb[0].mxu0
    %v1957 = vadd.f32 0.0, %v1956
    %v1958 = vpop.f32.mrb[0].mxu0
    %1959 = vmatprep.mubr.f32.mxu0 0.0
    %1960 = vmatmul.mubr.f32.gmra.mrb[0].mxu0 %v383
    %v1961 = vpop.f32.mrb[0].mxu0
    %v1962 = vadd.f32 0.0, %v1961
    %v1963 = vpop.f32.mrb[0].mxu0
    %1964 = vmatprep.mubr.f32.mxu0 0.0
    %1965 = vmatmul.mubr.f32.gmra.mrb[0].mxu0 %v386
    %v1966 = vpop.f32.mrb[0].mxu0
    %v1967 = vadd.f32 0.0, %v1966
    %v1968 = vpop.f32.mrb[0].mxu0
    %1969 = vmatprep.mubr.f32.mxu0 0.0
    %1970 = vmatmul.mubr.f32.gmra.mrb[0].mxu0 %v389
    %v1971 = vpop.f32.mrb[0].mxu0
    %v1972 = vadd.f32 0.0, %v1971
    %v1973 = vpop.f32.mrb[0].mxu0
    %1974 = vdwg.mxu0
    %1975 = vmatprep.subr.mxu0 0.0
    %1976 = vmatpush1.msra.mxu0 %v1710
    %1977 = vmatprep.subr.mxu0 0.0
    %1978 = vmatpush1.msra.mxu0 %v1715
    %1979 = vmatprep.subr.mxu0 0.0
    %1980 = vmatpush1.msra.mxu0 %v1720
    %1981 = vmatprep.subr.mxu0 0.0
    %1982 = vmatpush1.msra.mxu0 %v1725
    %1983 = vmatprep.subr.mxu0 0.0
    %1984 = vmatpush1.msra.mxu0 %v1730
    %1985 = vmatprep.subr.mxu0 0.0
    %1986 = vmatpush1.msra.mxu0 %v1735
    %1987 = vmatprep.subr.mxu0 0.0
    %1988 = vmatpush1.msra.mxu0 %v1740
    %1989 = vmatprep.subr.mxu0 0.0
    %1990 = vmatpush1.msra.mxu0 %v1745
    %1991 = vmatprep.subr.mxu0 0.0
    %1992 = vmatpush1.msra.mxu0 0.0
    %1993 = vmatprep.subr.mxu0 0.0
    %1994 = vmatpush1.msra.mxu0 0.0
    %1995 = vmatprep.subr.mxu0 0.0
    %1996 = vmatpush1.msra.mxu0 0.0
    %1997 = vmatprep.subr.mxu0 0.0
    %1998 = vmatpush1.msra.mxu0 0.0
    %1999 = vmatprep.subr.mxu0 0.0
    %2000 = vmatpush1.msra.mxu0 0.0
    %2001 = vmatprep.subr.mxu0 0.0
    %2002 = vmatpush1.msra.mxu0 0.0
    %2003 = vmatprep.subr.mxu0 0.0
    %2004 = vmatpush1.msra.mxu0 0.0
    %2005 = vmatprep.subr.mxu0 0.0
    %2006 = vmatpush1.msra.mxu0 0.0
    %2007 = vmatprep.subr.mxu0 0.0
    %2008 = vmatpush1.msra.mxu0 0.0
    %2009 = vmatprep.subr.mxu0 0.0
    %2010 = vmatpush1.msra.mxu0 0.0
    %2011 = vmatprep.subr.mxu0 0.0
    %2012 = vmatpush1.msra.mxu0 0.0
    %2013 = vmatprep.subr.mxu0 0.0
    %2014 = vmatpush1.msra.mxu0 0.0
    %2015 = vmatprep.subr.mxu0 0.0
    %2016 = vmatpush1.msra.mxu0 0.0
    %2017 = vmatprep.subr.mxu0 0.0
    %2018 = vmatpush1.msra.mxu0 0.0
    %2019 = vmatprep.subr.mxu0 0.0
    %2020 = vmatpush1.msra.mxu0 0.0
    %2021 = vmatprep.subr.mxu0 0.0
    %2022 = vmatpush1.msra.mxu0 0.0
    %2023 = vmatprep.subr.mxu0 0.0
    %2024 = vmatpush1.msra.mxu0 0.0
    %2025 = vmatprep.subr.mxu0 0.0
    %2026 = vmatpush1.msra.mxu0 0.0
    %2027 = vmatprep.subr.mxu0 0.0
    %2028 = vmatpush1.msra.mxu0 0.0
    %2029 = vmatprep.subr.mxu0 0.0
    %2030 = vmatpush1.msra.mxu0 0.0
    %2031 = vmatprep.subr.mxu0 0.0
    %2032 = vmatpush1.msra.mxu0 0.0
    %2033 = vmatprep.subr.mxu0 0.0
    %2034 = vmatpush1.msra.mxu0 0.0
    %2035 = vmatprep.subr.mxu0 0.0
    %2036 = vmatpush1.msra.mxu0 0.0
    %2037 = vmatprep.subr.mxu0 0.0
    %2038 = vmatpush1.msra.mxu0 0.0
    %2039 = vmatprep.mubr.f32.mxu0 0.0
    %2040 = vmatmul.mubr.f32.gmra.mrb[0].mxu0 %v497
    %v2041 = vpop.f32.mrb[0].mxu0
    %v2042 = vadd.f32 %v1937, %v2041
    %v2043 = vpop.f32.mrb[0].mxu0
    %2044 = vmatprep.mubr.f32.mxu0 0.0
    %2045 = vmatmul.mubr.f32.gmra.mrb[0].mxu0 %v500
    %v2046 = vpop.f32.mrb[0].mxu0
    %v2047 = vadd.f32 %v1942, %v2046
    %v2048 = vpop.f32.mrb[0].mxu0
    %2049 = vmatprep.mubr.f32.mxu0 0.0
    %2050 = vmatmul.mubr.f32.gmra.mrb[0].mxu0 %v503
    %v2051 = vpop.f32.mrb[0].mxu0
    %v2052 = vadd.f32 %v1947, %v2051
    %v2053 = vpop.f32.mrb[0].mxu0
    %2054 = vmatprep.mubr.f32.mxu0 0.0
    %2055 = vmatmul.mubr.f32.gmra.mrb[0].mxu0 %v506
    %v2056 = vpop.f32.mrb[0].mxu0
    %v2057 = vadd.f32 %v1952, %v2056
    %v2058 = vpop.f32.mrb[0].mxu0
    %2059 = vmatprep.mubr.f32.mxu0 0.0
    %2060 = vmatmul.mubr.f32.gmra.mrb[0].mxu0 %v509
    %v2061 = vpop.f32.mrb[0].mxu0
    %v2062 = vadd.f32 %v1957, %v2061
    %v2063 = vpop.f32.mrb[0].mxu0
    %2064 = vmatprep.mubr.f32.mxu0 0.0
    %2065 = vmatmul.mubr.f32.gmra.mrb[0].mxu0 %v512
    %v2066 = vpop.f32.mrb[0].mxu0
    %v2067 = vadd.f32 %v1962, %v2066
    %v2068 = vpop.f32.mrb[0].mxu0
    %2069 = vmatprep.mubr.f32.mxu0 0.0
    %2070 = vmatmul.mubr.f32.gmra.mrb[0].mxu0 %v515
    %v2071 = vpop.f32.mrb[0].mxu0
    %v2072 = vadd.f32 %v1967, %v2071
    %v2073 = vpop.f32.mrb[0].mxu0
    %2074 = vmatprep.mubr.f32.mxu0 0.0
    %2075 = vmatmul.mubr.f32.gmra.mrb[0].mxu0 %v518
    %v2076 = vpop.f32.mrb[0].mxu0
    %v2077 = vadd.f32 %v1972, %v2076
    %v2078 = vpop.f32.mrb[0].mxu0
    %2079 = vdwg.mxu0
    %s2080 = scalar_lea.vmem [#allocation10], 256
    %v2081 = vld [vmem:[%s2080] sm:$0xff]
    %v2082 = vld [vmem:[%s2080 + $0x8] sm:$0xff]
    %v2083 = vld [vmem:[%s2080 + $0x10] sm:$0xff]
    %v2084 = vld [vmem:[%s2080 + $0x18] sm:$0xff]
    %v2085 = vld [vmem:[%s2080 + $0x20] sm:$0xff]
    %v2086 = vld [vmem:[%s2080 + $0x28] sm:$0xff]
    %v2087 = vld [vmem:[%s2080 + $0x30] sm:$0xff]
    %v2088 = vld [vmem:[%s2080 + $0x38] sm:$0xff]
    %v2089 = vld [vmem:[%s2080 + $0x40] sm:$0xff]
    %v2090 = vld [vmem:[%s2080 + $0x48] sm:$0xff]
    %v2091 = vld [vmem:[%s2080 + $0x50] sm:$0xff]
    %v2092 = vld [vmem:[%s2080 + $0x58] sm:$0xff]
    %v2093 = vld [vmem:[%s2080 + $0x60] sm:$0xff]
    %v2094 = vld [vmem:[%s2080 + $0x68] sm:$0xff]
    %v2095 = vld [vmem:[%s2080 + $0x70] sm:$0xff]
    %v2096 = vld [vmem:[%s2080 + $0x78] sm:$0xff]
    %2097 = vmatprep.subr.mxu0 0.0
    %2098 = vmatpush1.msra.mxu0 %v2081
    %2099 = vmatprep.subr.mxu0 0.0
    %2100 = vmatpush1.msra.mxu0 %v2082
    %2101 = vmatprep.subr.mxu0 0.0
    %2102 = vmatpush1.msra.mxu0 %v2083
    %2103 = vmatprep.subr.mxu0 0.0
    %2104 = vmatpush1.msra.mxu0 %v2084
    %2105 = vmatprep.subr.mxu0 0.0
    %2106 = vmatpush1.msra.mxu0 %v2085
    %2107 = vmatprep.subr.mxu0 0.0
    %2108 = vmatpush1.msra.mxu0 %v2086
    %2109 = vmatprep.subr.mxu0 0.0
    %2110 = vmatpush1.msra.mxu0 %v2087
    %2111 = vmatprep.subr.mxu0 0.0
    %2112 = vmatpush1.msra.mxu0 %v2088
    %2113 = vmatprep.subr.mxu0 0.0
    %2114 = vmatpush1.msra.mxu0 %v2089
    %2115 = vmatprep.subr.mxu0 0.0
    %2116 = vmatpush1.msra.mxu0 %v2090
    %2117 = vmatprep.subr.mxu0 0.0
    %2118 = vmatpush1.msra.mxu0 %v2091
    %2119 = vmatprep.subr.mxu0 0.0
    %2120 = vmatpush1.msra.mxu0 %v2092
    %2121 = vmatprep.subr.mxu0 0.0
    %2122 = vmatpush1.msra.mxu0 %v2093
    %2123 = vmatprep.subr.mxu0 0.0
    %2124 = vmatpush1.msra.mxu0 %v2094
    %2125 = vmatprep.subr.mxu0 0.0
    %2126 = vmatpush1.msra.mxu0 %v2095
    %2127 = vmatprep.subr.mxu0 0.0
    %2128 = vmatpush1.msra.mxu0 %v2096
    %2129 = vmatprep.subr.mxu0 0.0
    %2130 = vmatpush1.msra.mxu0 0.0
    %2131 = vmatprep.subr.mxu0 0.0
    %2132 = vmatpush1.msra.mxu0 0.0
    %2133 = vmatprep.subr.mxu0 0.0
    %2134 = vmatpush1.msra.mxu0 0.0
    %2135 = vmatprep.subr.mxu0 0.0
    %2136 = vmatpush1.msra.mxu0 0.0
    %2137 = vmatprep.subr.mxu0 0.0
    %2138 = vmatpush1.msra.mxu0 0.0
    %2139 = vmatprep.subr.mxu0 0.0
    %2140 = vmatpush1.msra.mxu0 0.0
    %2141 = vmatprep.subr.mxu0 0.0
    %2142 = vmatpush1.msra.mxu0 0.0
    %2143 = vmatprep.subr.mxu0 0.0
    %2144 = vmatpush1.msra.mxu0 0.0
    %2145 = vmatprep.subr.mxu0 0.0
    %2146 = vmatpush1.msra.mxu0 0.0
    %2147 = vmatprep.subr.mxu0 0.0
    %2148 = vmatpush1.msra.mxu0 0.0
    %2149 = vmatprep.subr.mxu0 0.0
    %2150 = vmatpush1.msra.mxu0 0.0
    %2151 = vmatprep.subr.mxu0 0.0
    %2152 = vmatpush1.msra.mxu0 0.0
    %2153 = vmatprep.subr.mxu0 0.0
    %2154 = vmatpush1.msra.mxu0 0.0
    %2155 = vmatprep.subr.mxu0 0.0
    %2156 = vmatpush1.msra.mxu0 0.0
    %2157 = vmatprep.subr.mxu0 0.0
    %2158 = vmatpush1.msra.mxu0 0.0
    %2159 = vmatprep.subr.mxu0 0.0
    %2160 = vmatpush1.msra.mxu0 0.0
    %2161 = vmatprep.mubr.f32.mxu0 0.0
    %2162 = vmatmul.mubr.f32.gmra.mrb[0].mxu0 %v1619
    %v2163 = vpop.f32.mrb[0].mxu0
    %v2164 = vadd.f32 0.0, %v2163
    %v2165 = vpop.f32.mrb[0].mxu0
    %2166 = vmatprep.mubr.f32.mxu0 0.0
    %2167 = vmatmul.mubr.f32.gmra.mrb[0].mxu0 %v1620
    %v2168 = vpop.f32.mrb[0].mxu0
    %v2169 = vadd.f32 0.0, %v2168
    %v2170 = vpop.f32.mrb[0].mxu0
    %2171 = vmatprep.mubr.f32.mxu0 0.0
    %2172 = vmatmul.mubr.f32.gmra.mrb[0].mxu0 %v1621
    %v2173 = vpop.f32.mrb[0].mxu0
    %v2174 = vadd.f32 0.0, %v2173
    %v2175 = vpop.f32.mrb[0].mxu0
    %2176 = vmatprep.mubr.f32.mxu0 0.0
    %2177 = vmatmul.mubr.f32.gmra.mrb[0].mxu0 %v1622
    %v2178 = vpop.f32.mrb[0].mxu0
    %v2179 = vadd.f32 0.0, %v2178
    %v2180 = vpop.f32.mrb[0].mxu0
    %2181 = vmatprep.mubr.f32.mxu0 0.0
    %2182 = vmatmul.mubr.f32.gmra.mrb[0].mxu0 %v1623
    %v2183 = vpop.f32.mrb[0].mxu0
    %v2184 = vadd.f32 0.0, %v2183
    %v2185 = vpop.f32.mrb[0].mxu0
    %2186 = vmatprep.mubr.f32.mxu0 0.0
    %2187 = vmatmul.mubr.f32.gmra.mrb[0].mxu0 %v1624
    %v2188 = vpop.f32.mrb[0].mxu0
    %v2189 = vadd.f32 0.0, %v2188
    %v2190 = vpop.f32.mrb[0].mxu0
    %2191 = vmatprep.mubr.f32.mxu0 0.0
    %2192 = vmatmul.mubr.f32.gmra.mrb[0].mxu0 %v1625
    %v2193 = vpop.f32.mrb[0].mxu0
    %v2194 = vadd.f32 0.0, %v2193
    %v2195 = vpop.f32.mrb[0].mxu0
    %2196 = vmatprep.mubr.f32.mxu0 0.0
    %2197 = vmatmul.mubr.f32.gmra.mrb[0].mxu0 %v1626
    %v2198 = vpop.f32.mrb[0].mxu0
    %v2199 = vadd.f32 0.0, %v2198
    %v2200 = vpop.f32.mrb[0].mxu0
    %2201 = vdwg.mxu0
    %2202 = vmatprep.subr.mxu0 0.0
    %2203 = vmatpush1.msra.mxu0 %v2164
    %2204 = vmatprep.subr.mxu0 0.0
    %2205 = vmatpush1.msra.mxu0 %v2169
    %2206 = vmatprep.subr.mxu0 0.0
    %2207 = vmatpush1.msra.mxu0 %v2174
    %2208 = vmatprep.subr.mxu0 0.0
    %2209 = vmatpush1.msra.mxu0 %v2179
    %2210 = vmatprep.subr.mxu0 0.0
    %2211 = vmatpush1.msra.mxu0 %v2184
    %2212 = vmatprep.subr.mxu0 0.0
    %2213 = vmatpush1.msra.mxu0 %v2189
    %2214 = vmatprep.subr.mxu0 0.0
    %2215 = vmatpush1.msra.mxu0 %v2194
    %2216 = vmatprep.subr.mxu0 0.0
    %2217 = vmatpush1.msra.mxu0 %v2199
    %2218 = vmatprep.subr.mxu0 0.0
    %2219 = vmatpush1.msra.mxu0 0.0
    %2220 = vmatprep.subr.mxu0 0.0
    %2221 = vmatpush1.msra.mxu0 0.0
    %2222 = vmatprep.subr.mxu0 0.0
    %2223 = vmatpush1.msra.mxu0 0.0
    %2224 = vmatprep.subr.mxu0 0.0
    %2225 = vmatpush1.msra.mxu0 0.0
    %2226 = vmatprep.subr.mxu0 0.0
    %2227 = vmatpush1.msra.mxu0 0.0
    %2228 = vmatprep.subr.mxu0 0.0
    %2229 = vmatpush1.msra.mxu0 0.0
    %2230 = vmatprep.subr.mxu0 0.0
    %2231 = vmatpush1.msra.mxu0 0.0
    %2232 = vmatprep.subr.mxu0 0.0
    %2233 = vmatpush1.msra.mxu0 0.0
    %2234 = vmatprep.subr.mxu0 0.0
    %2235 = vmatpush1.msra.mxu0 0.0
    %2236 = vmatprep.subr.mxu0 0.0
    %2237 = vmatpush1.msra.mxu0 0.0
    %2238 = vmatprep.subr.mxu0 0.0
    %2239 = vmatpush1.msra.mxu0 0.0
    %2240 = vmatprep.subr.mxu0 0.0
    %2241 = vmatpush1.msra.mxu0 0.0
    %2242 = vmatprep.subr.mxu0 0.0
    %2243 = vmatpush1.msra.mxu0 0.0
    %2244 = vmatprep.subr.mxu0 0.0
    %2245 = vmatpush1.msra.mxu0 0.0
    %2246 = vmatprep.subr.mxu0 0.0
    %2247 = vmatpush1.msra.mxu0 0.0
    %2248 = vmatprep.subr.mxu0 0.0
    %2249 = vmatpush1.msra.mxu0 0.0
    %2250 = vmatprep.subr.mxu0 0.0
    %2251 = vmatpush1.msra.mxu0 0.0
    %2252 = vmatprep.subr.mxu0 0.0
    %2253 = vmatpush1.msra.mxu0 0.0
    %2254 = vmatprep.subr.mxu0 0.0
    %2255 = vmatpush1.msra.mxu0 0.0
    %2256 = vmatprep.subr.mxu0 0.0
    %2257 = vmatpush1.msra.mxu0 0.0
    %2258 = vmatprep.subr.mxu0 0.0
    %2259 = vmatpush1.msra.mxu0 0.0
    %2260 = vmatprep.subr.mxu0 0.0
    %2261 = vmatpush1.msra.mxu0 0.0
    %2262 = vmatprep.subr.mxu0 0.0
    %2263 = vmatpush1.msra.mxu0 0.0
    %2264 = vmatprep.subr.mxu0 0.0
    %2265 = vmatpush1.msra.mxu0 0.0
    %2266 = vmatprep.mubr.f32.mxu0 0.0
    %2267 = vmatmul.mubr.f32.gmra.mrb[0].mxu0 %v757
    %v2268 = vpop.f32.mrb[0].mxu0
    %v2269 = vadd.f32 0.0, %v2268
    %v2270 = vpop.f32.mrb[0].mxu0
    %2271 = vmatprep.mubr.f32.mxu0 0.0
    %2272 = vmatmul.mubr.f32.gmra.mrb[0].mxu0 %v760
    %v2273 = vpop.f32.mrb[0].mxu0
    %v2274 = vadd.f32 0.0, %v2273
    %v2275 = vpop.f32.mrb[0].mxu0
    %2276 = vmatprep.mubr.f32.mxu0 0.0
    %2277 = vmatmul.mubr.f32.gmra.mrb[0].mxu0 %v763
    %v2278 = vpop.f32.mrb[0].mxu0
    %v2279 = vadd.f32 0.0, %v2278
    %v2280 = vpop.f32.mrb[0].mxu0
    %2281 = vmatprep.mubr.f32.mxu0 0.0
    %2282 = vmatmul.mubr.f32.gmra.mrb[0].mxu0 %v766
    %v2283 = vpop.f32.mrb[0].mxu0
    %v2284 = vadd.f32 0.0, %v2283
    %v2285 = vpop.f32.mrb[0].mxu0
    %2286 = vmatprep.mubr.f32.mxu0 0.0
    %2287 = vmatmul.mubr.f32.gmra.mrb[0].mxu0 %v769
    %v2288 = vpop.f32.mrb[0].mxu0
    %v2289 = vadd.f32 0.0, %v2288
    %v2290 = vpop.f32.mrb[0].mxu0
    %2291 = vmatprep.mubr.f32.mxu0 0.0
    %2292 = vmatmul.mubr.f32.gmra.mrb[0].mxu0 %v772
    %v2293 = vpop.f32.mrb[0].mxu0
    %v2294 = vadd.f32 0.0, %v2293
    %v2295 = vpop.f32.mrb[0].mxu0
    %2296 = vmatprep.mubr.f32.mxu0 0.0
    %2297 = vmatmul.mubr.f32.gmra.mrb[0].mxu0 %v775
    %v2298 = vpop.f32.mrb[0].mxu0
    %v2299 = vadd.f32 0.0, %v2298
    %v2300 = vpop.f32.mrb[0].mxu0
    %2301 = vmatprep.mubr.f32.mxu0 0.0
    %2302 = vmatmul.mubr.f32.gmra.mrb[0].mxu0 %v778
    %v2303 = vpop.f32.mrb[0].mxu0
    %v2304 = vadd.f32 0.0, %v2303
    %v2305 = vpop.f32.mrb[0].mxu0
    %2306 = vdwg.mxu0
    %v2307 = vadd.f32 %v2042, %v2269
    %v2308 = vadd.f32 %v2047, %v2274
    %v2309 = vadd.f32 %v2052, %v2279
    %v2310 = vadd.f32 %v2057, %v2284
    %v2311 = vadd.f32 %v2062, %v2289
    %v2312 = vadd.f32 %v2067, %v2294
    %v2313 = vadd.f32 %v2072, %v2299
    %v2314 = vadd.f32 %v2077, %v2304
    %v2315 = vld [vmem:[%s7] sm:$0x1]
    %v2317 = vlaneseq
    %v2318 = vshrl.u32 %v2317, 7
    %v2319 = vsub.s32 0, %v2318
    %v2320 = vrot.slane %v2315, %v2319
    %v2322 = vadd.f32 %v2307, %v2320
    %v2323 = vadd.f32 %v2308, %v2320
    %v2324 = vadd.f32 %v2309, %v2320
    %v2325 = vadd.f32 %v2310, %v2320
    %v2326 = vadd.f32 %v2311, %v2320
    %v2327 = vadd.f32 %v2312, %v2320
    %v2328 = vadd.f32 %v2313, %v2320
    %v2329 = vadd.f32 %v2314, %v2320
    %2330 = vst [vmem:[#allocation11] sm:$0xff] %v2322
    %2331 = vst [vmem:[#allocation11 + $0x8] sm:$0xff] %v2323
    %2332 = vst [vmem:[#allocation11 + $0x10] sm:$0xff] %v2324
    %2333 = vst [vmem:[#allocation11 + $0x18] sm:$0xff] %v2325
    %2334 = vst [vmem:[#allocation11 + $0x20] sm:$0xff] %v2326
    %2335 = vst [vmem:[#allocation11 + $0x28] sm:$0xff] %v2327
    %2336 = vst [vmem:[#allocation11 + $0x30] sm:$0xff] %v2328
    %2337 = vst [vmem:[#allocation11 + $0x38] sm:$0xff] %v2329
    // Predicated region
    $region54: #{tpu_custom_call.1} parent=1 // pred_check
      _
    $region55: #{tpu_custom_call.1} parent=1 // pred_check_branch
      %2339 = sbr.rel (0) target = $region57
    $region56: #{tpu_custom_call.1} parent=1 // pred_region
      %s2341 = ssub.s32 1024, 1024
      %2342 = vsyncadd [#allocation4], %s2341
      %s2343 = sshll.u32 [#allocation11], 4
      %s2344 = int_to_ptr.vmem [resolvable:$true] %s2343
      %2349 = dma.vmem_to_hbm [thread:$0]  %s2344, 1024, %s8, [#allocation4], 128, 128, 8
    $region57: #{tpu_custom_call.1} parent=1 // pred_fallthru
      _
    // Predicated region
    $region58: #{tpu_custom_call.1} parent=1 // pred_check
      _
    $region59: #{tpu_custom_call.1} parent=1 // pred_check_branch
      %2351 = sbr.rel (0) target = $region61
    $region60: #{tpu_custom_call.1} parent=1 // pred_region
      %2352 = dma.done [#allocation4], 1024
    $region61: #{tpu_custom_call.1} parent=1 // pred_fallthru
      _
    %2353 = vsyncpa [#allocation3], 1
    %2354 = vsyncpa [#allocation6], 1
    %2355 = vsyncpa [#allocation9], 1
    %2356 = vsyncpa [#allocation4], 1

</llo_original>
